<compile_context>
chip_gen: v5e
topology: v5e:2x2
jax: 0.10.0
libtpu: 0.0.40
codegen_flags: <defaults>
</compile_context>

<pallas_src>
import jax
import jax.numpy as jnp
from jax import lax
from jax.experimental import pallas as pl
from jax.experimental.pallas import tpu as pltpu

LN_EPS = 1e-5


def _round_up(x, m):
    return ((x + m - 1) // m) * m


# ----------------------------------------------------------------------------
# Fused MLP kernel: one grid step = one tile of batch rows through all 4 layers.
# ----------------------------------------------------------------------------
def _fused_mlp_kernel(x_ref,
                      w0_ref, g0_ref, b0_ref,
                      w1_ref, g1_ref, b1_ref,
                      w2_ref, bias2_ref,
                      w3_ref, bias3_ref,
                      o_ref):
    def ln_relu(a_f32, g_ref, b_ref):
        # torch nn.LayerNorm (biased variance, eps inside sqrt), one-pass stats:
        # E[a] and E[a^2] computed together so the two XLU reductions overlap;
        # var = E[a^2] - mean^2 in f32, clamped >= 0 for stability.
        mean = jnp.mean(a_f32, axis=-1, keepdims=True)
        mean_sq = jnp.mean(a_f32 * a_f32, axis=-1, keepdims=True)
        var = jnp.maximum(mean_sq - mean * mean, 0.0)
        y = (a_f32 - mean) * lax.rsqrt(var + LN_EPS)
        y = y * g_ref[...].astype(jnp.float32) + b_ref[...].astype(jnp.float32)
        return jnp.maximum(y, 0.0)

    x = x_ref[...]

    # lin0: Linear(bias=False) -> LayerNorm -> ReLU -> Dropout (identity in eval)
    a0 = jnp.dot(x, w0_ref[...], preferred_element_type=jnp.float32)
    h0 = ln_relu(a0, g0_ref, b0_ref)

    # residual block (n_blocks = 1): Linear(no bias) -> LN -> ReLU, then + residual
    a1 = jnp.dot(h0.astype(w1_ref.dtype), w1_ref[...],
                 preferred_element_type=jnp.float32)
    h1 = ln_relu(a1, g1_ref, b1_ref) + h0          # in-vreg residual add (f32)

    # linear1 (with bias)
    a2 = jnp.dot(h1.astype(w2_ref.dtype), w2_ref[...],
                 preferred_element_type=jnp.float32)
    a2 = a2 + bias2_ref[...].astype(jnp.float32)

    # reshape(len(x), -1) is identity for 2-D activations.
    # final_mlp: Linear(h, out_dim) with bias
    a3 = jnp.dot(a2.astype(w3_ref.dtype), w3_ref[...],
                 preferred_element_type=jnp.float32)
    a3 = a3 + bias3_ref[...].astype(jnp.float32)

    o_ref[...] = a3.astype(o_ref.dtype)


# ----------------------------------------------------------------------------
# Wrapper helpers
# ----------------------------------------------------------------------------
_row_map = lambda i: (i, 0)     # batch-row tiles march down the grid
_pin_map = lambda i: (0, 0)     # weights / vectors: same block every step -> VMEM-resident


def _pinned_spec(shape):
    """Pinned operand spec: constant index_map -> single VMEM buffer (no double-buffer)."""
    try:
        return pl.BlockSpec(shape, _pin_map, pipeline_mode=pl.Buffered(1))
    except TypeError:   # older jax without pipeline_mode kwarg: fall back to default
        return pl.BlockSpec(shape, _pin_map)


def _pick_row_tile(m, block_m, sublane):
    """Row-tile size: sublane-aligned, <= block_m, and >= 2 tiles when the batch allows
    it so the 'parallel' grid axis has work for both TensorCores on v7x."""
    block_m = max(_round_up(block_m, sublane), sublane)
    if m <= 2 * block_m:
        tm = _round_up(pl.cdiv(m, 2), sublane)
        return min(tm, block_m)
    return block_m


def _vmem_limit_bytes(pinned_arrays, tm, in_dim_p, h, out_dim, x_itemsize):
    """Footprint-derived VMEM budget: pinned weights (single-buffered) + double-buffered
    x/out tiles + f32 activation scratch, x1.5 + 8 MiB slack, clamped to [32, 100] MiB
    (the cap only binds on v5e/v6e-sized configs; small configs stay well under v7x's 64 MiB)."""
    pinned = sum(int(a.size) * a.dtype.itemsize for a in pinned_arrays)
    tiles = 2 * tm * in_dim_p * x_itemsize + 2 * tm * out_dim * 4
    act = 6 * tm * h * 4
    need = pinned + tiles + act
    return int(min(max(need * 3 // 2 + (8 << 20), 32 << 20), 100 << 20))


# ----------------------------------------------------------------------------
# Wrapper
# ----------------------------------------------------------------------------
def mlp_forward(x, params, *, block_m=128, mxu_dtype=jnp.bfloat16):
    """Fused forward of the whole MLP in a single pallas_call.

    x:        [batch, in_dim]
    params:   dict of weights (stored [in, out]) / LN params / biases.
    block_m:  max rows per grid step (128 matches the v5e MXU; use 256 on v6e/v7x
              for large batches).
    mxu_dtype: dtype of matmul operands (default bf16 = native MXU path on all
              generations); LN / residual / bias math and accumulation stay f32.
              Pass None for exact f32 operands.
    """
    M, in_dim = x.shape
    h = params["w0"].shape[1]
    out_dim = params["w3"].shape[1]
    out_dtype = x.dtype

    w0, w1, w2, w3 = params["w0"], params["w1"], params["w2"], params["w3"]

    # Lane-dense K for the first matmul: pad in_dim to a multiple of 128 with zero
    # columns in x / zero rows in W0 (mathematically identity). h / out_dim should
    # already be multiples of 128 (true for the real 4096 / 6400 shapes).
    in_dim_p = _round_up(in_dim, 128)
    if in_dim_p != in_dim:
        x = jnp.pad(x, ((0, 0), (0, in_dim_p - in_dim)))
        w0 = jnp.pad(w0, ((0, in_dim_p - in_dim), (0, 0)))

    op_dtype = jnp.dtype(mxu_dtype) if mxu_dtype is not None else jnp.dtype(x.dtype)
    sublane = {4: 8, 2: 16, 1: 32}.get(op_dtype.itemsize, 8)

    tm = _pick_row_tile(M, block_m, sublane)
    m_pad = _round_up(M, tm)
    if m_pad != M:
        # Padded rows are zeros; they are row-independent and LN-safe
        # (var=0 -> rsqrt(eps) * 0), and are sliced off below.
        x = jnp.pad(x, ((0, m_pad - M), (0, 0)))

    if mxu_dtype is not None:
        x = x.astype(mxu_dtype)
        w0, w1, w2, w3 = (w.astype(mxu_dtype) for w in (w0, w1, w2, w3))

    g0 = params["g0"].reshape(1, h)
    b0 = params["b0"].reshape(1, h)
    g1 = params["g1"].reshape(1, h)
    b1 = params["b1"].reshape(1, h)
    bias2 = params["bias2"].reshape(1, h)
    bias3 = params["bias3"].reshape(1, out_dim)

    pinned = (w0, g0, b0, w1, g1, b1, w2, bias2, w3, bias3)
    vmem_limit = _vmem_limit_bytes(pinned, tm, in_dim_p, h, out_dim,
                                   jnp.dtype(x.dtype).itemsize)

    in_specs = [
        pl.BlockSpec((tm, in_dim_p), _row_map),    # x tile (default double-buffered)
        _pinned_spec((in_dim_p, h)),               # W0
        _pinned_spec((1, h)),                      # gamma0
        _pinned_spec((1, h)),                      # beta0
        _pinned_spec((h, h)),                      # W1
        _pinned_spec((1, h)),                      # gamma1
        _pinned_spec((1, h)),                      # beta1
        _pinned_spec((h, h)),                      # W2
        _pinned_spec((1, h)),                      # bias2
        _pinned_spec((h, out_dim)),                # W3
        _pinned_spec((1, out_dim)),                # bias3
    ]
    out_spec = pl.BlockSpec((tm, out_dim), _row_map)

    out = pl.pallas_call(
        _fused_mlp_kernel,
        out_shape=jax.ShapeDtypeStruct((m_pad, out_dim), out_dtype),
        grid_spec=pltpu.PrefetchScalarGridSpec(
            num_scalar_prefetch=0,
            grid=(m_pad // tm,),                   # single batch-row axis
            in_specs=in_specs,
            out_specs=out_spec,
        ),
        compiler_params=pltpu.CompilerParams(
            # "parallel" only matters on v7x (2 TCs); harmless on v5e/v6e.
            dimension_semantics=("parallel",),
            vmem_limit_bytes=vmem_limit,
        ),
    )(x, w0, g0, b0, w1, g1, b1, w2, bias2, w3, bias3)

    return out[:M] if m_pad != M else out


# ----------------------------------------------------------------------------
# Pure-JAX reference + params
# ----------------------------------------------------------------------------
def mlp_reference(x, params, operand_dtype=None):
    """Reference matching the PyTorch module. If operand_dtype is set, matmul
    operands are cast to it (to mirror the kernel's MXU dtype); accumulation f32."""
    def dot(a, w):
        if operand_dtype is not None:
            a = a.astype(operand_dtype)
            w = w.astype(operand_dtype)
        return jnp.dot(a, w, preferred_element_type=jnp.float32)

    def ln_relu(a, g, b):
        mean = jnp.mean(a, axis=-1, keepdims=True)
        var = jnp.mean((a - mean) ** 2, axis=-1, keepdims=True)
        return jnp.maximum((a - mean) / jnp.sqrt(var + LN_EPS) * g + b, 0.0)

    a = ln_relu(dot(x, params["w0"]), params["g0"], params["b0"])
    r = a
    a = ln_relu(dot(a, params["w1"]), params["g1"], params["b1"]) + r
    a = dot(a, params["w2"]) + params["bias2"]
    a = a.reshape(a.shape[0], -1)
    a = dot(a, params["w3"]) + params["bias3"]
    return a


def make_params(key, in_dim, h, out_dim, dtype=jnp.float32):
    ks = jax.random.split(key, 6)
    scale = 0.02
    return {
        # weights stored [in, out] (transposed vs torch nn.Linear)
        "w0": (scale * jax.random.normal(ks[0], (in_dim, h))).astype(dtype),
        "g0": jnp.ones((h,), dtype),          # nn.LayerNorm default init
        "b0": jnp.zeros((h,), dtype),
        "w1": (scale * jax.random.normal(ks[1], (h, h))).astype(dtype),
        "g1": jnp.ones((h,), dtype),
        "b1": jnp.zeros((h,), dtype),
        "w2": (scale * jax.random.normal(ks[2], (h, h))).astype(dtype),
        "bias2": (scale * jax.random.normal(ks[3], (h,))).astype(dtype),
        "w3": (scale * jax.random.normal(ks[4], (h, out_dim))).astype(dtype),
        "bias3": (scale * jax.random.normal(ks[5], (out_dim,))).astype(dtype),
    }


if __name__ == "__main__":
    # Small shapes consistent with the module's 2-D forward: x is [batch, in_dim].
    # Batch deliberately NOT a multiple of 8/16 to exercise ragged-row padding.
    B, IN_DIM, H, OUT_DIM = 12, 256, 256, 128

    key = jax.random.PRNGKey(0)
    kx, kp = jax.random.split(key)
    x = jax.random.normal(kx, (B, IN_DIM), dtype=jnp.float32)
    params = make_params(kp, IN_DIM, H, OUT_DIM)

    # 1) f32-operand path vs pure-JAX f32 reference (tolerance allows for the
    #    different matmul pass decompositions XLA/Mosaic may pick for f32 on TPU).
    out_f32 = jax.block_until_ready(mlp_forward(x, params, mxu_dtype=None))
    ref_f32 = jax.block_until_ready(mlp_reference(x, params))
    assert out_f32.shape == (B, OUT_DIM), out_f32.shape
    assert jnp.allclose(out_f32, ref_f32, atol=1e-2, rtol=1e-2), \
        "f32 path mismatch vs JAX reference"

    # 2) Default bf16-operand MXU path vs a bf16-operand reference
    #    (expected bf16 quantization, hence the wider tolerance).
    out_bf16 = jax.block_until_ready(mlp_forward(x, params))
    ref_bf16 = jax.block_until_ready(
        mlp_reference(x, params, operand_dtype=jnp.bfloat16))
    assert out_bf16.shape == (B, OUT_DIM), out_bf16.shape
    assert jnp.allclose(out_bf16, ref_bf16, atol=3e-2, rtol=3e-2), \
        "bf16 path mismatch vs bf16-operand JAX reference"

    print("KERNEL_OK")
</pallas_src>

<mosaic_0001>
module attributes {stable_mosaic.version = 11 : i64} {
  func.func @_fused_mlp_kernel(%arg0: i32, %arg1: memref<8x256xf32, #tpu.memory_space<vmem>>, %arg2: memref<256x256xf32, #tpu.memory_space<vmem>>, %arg3: memref<1x256xf32, #tpu.memory_space<vmem>>, %arg4: memref<1x256xf32, #tpu.memory_space<vmem>>, %arg5: memref<256x256xf32, #tpu.memory_space<vmem>>, %arg6: memref<1x256xf32, #tpu.memory_space<vmem>>, %arg7: memref<1x256xf32, #tpu.memory_space<vmem>>, %arg8: memref<256x256xf32, #tpu.memory_space<vmem>>, %arg9: memref<1x256xf32, #tpu.memory_space<vmem>>, %arg10: memref<256x128xf32, #tpu.memory_space<vmem>>, %arg11: memref<1x128xf32, #tpu.memory_space<vmem>>, %arg12: memref<8x128xf32, #tpu.memory_space<vmem>>) attributes {dimension_semantics = [#tpu.dimension_semantics<parallel>], iteration_bounds = array<i64: 2>, scalar_prefetch = 0 : i64, scratch_operands = 0 : i64, tpu.core_type = #tpu.core_type<tc>, window_params = [{transform_indices = @transform_0, window_bounds = array<i64: 8, 256>}, {pipeline_mode = #tpu.pipeline_mode<synchronous>, transform_indices = @transform_1, window_bounds = array<i64: 256, 256>}, {pipeline_mode = #tpu.pipeline_mode<synchronous>, transform_indices = @transform_2, window_bounds = array<i64: 1, 256>}, {pipeline_mode = #tpu.pipeline_mode<synchronous>, transform_indices = @transform_3, window_bounds = array<i64: 1, 256>}, {pipeline_mode = #tpu.pipeline_mode<synchronous>, transform_indices = @transform_4, window_bounds = array<i64: 256, 256>}, {pipeline_mode = #tpu.pipeline_mode<synchronous>, transform_indices = @transform_5, window_bounds = array<i64: 1, 256>}, {pipeline_mode = #tpu.pipeline_mode<synchronous>, transform_indices = @transform_6, window_bounds = array<i64: 1, 256>}, {pipeline_mode = #tpu.pipeline_mode<synchronous>, transform_indices = @transform_7, window_bounds = array<i64: 256, 256>}, {pipeline_mode = #tpu.pipeline_mode<synchronous>, transform_indices = @transform_8, window_bounds = array<i64: 1, 256>}, {pipeline_mode = #tpu.pipeline_mode<synchronous>, transform_indices = @transform_9, window_bounds = array<i64: 256, 128>}, {pipeline_mode = #tpu.pipeline_mode<synchronous>, transform_indices = @transform_10, window_bounds = array<i64: 1, 128>}, {transform_indices = @transform_11, window_bounds = array<i64: 8, 128>}]} {
    %c0 = arith.constant 0 : index
    %c0_0 = arith.constant 0 : index
    %0 = vector.load %arg1[%c0, %c0_0] : memref<8x256xf32, #tpu.memory_space<vmem>>, vector<8x256xf32>
    %c0_1 = arith.constant 0 : index
    %c0_2 = arith.constant 0 : index
    %1 = vector.load %arg2[%c0_1, %c0_2] : memref<256x256xf32, #tpu.memory_space<vmem>>, vector<256x256xf32>
    %cst = arith.constant dense<0.000000e+00> : vector<8x256xf32>
    %2 = tpu.matmul %0, %1, %cst {dimension_numbers = #tpu.dot_dimension_numbers<[1], [0], [0], [1], [0, 0, 1, 1], [], []>} : vector<8x256xf32>, vector<256x256xf32>, vector<8x256xf32> -> vector<8x256xf32>
    %cst_3 = arith.constant dense<0.000000e+00> : vector<8xf32>
    %3 = vector.multi_reduction <add>, %2, %cst_3 [1] : vector<8x256xf32> to vector<8xf32>
    %4 = vector.shape_cast %3 : vector<8xf32> to vector<8x1xf32>
    %cst_4 = arith.constant 2.560000e+02 : f32
    %5 = vector.broadcast %cst_4 : f32 to vector<8x1xf32>
    %6 = arith.divf %4, %5 : vector<8x1xf32>
    %7 = arith.mulf %2, %2 : vector<8x256xf32>
    %cst_5 = arith.constant dense<0.000000e+00> : vector<8xf32>
    %8 = vector.multi_reduction <add>, %7, %cst_5 [1] : vector<8x256xf32> to vector<8xf32>
    %9 = vector.shape_cast %8 : vector<8xf32> to vector<8x1xf32>
    %cst_6 = arith.constant 2.560000e+02 : f32
    %10 = vector.broadcast %cst_6 : f32 to vector<8x1xf32>
    %11 = arith.divf %9, %10 : vector<8x1xf32>
    %12 = arith.mulf %6, %6 : vector<8x1xf32>
    %13 = arith.subf %11, %12 : vector<8x1xf32>
    %cst_7 = arith.constant 0.000000e+00 : f32
    %14 = vector.broadcast %cst_7 : f32 to vector<8x1xf32>
    %15 = arith.maximumf %13, %14 : vector<8x1xf32>
    %16 = vector.broadcast %6 : vector<8x1xf32> to vector<8x256xf32>
    %17 = arith.subf %2, %16 : vector<8x256xf32>
    %cst_8 = arith.constant 9.99999974E-6 : f32
    %18 = vector.broadcast %cst_8 : f32 to vector<8x1xf32>
    %19 = arith.addf %15, %18 : vector<8x1xf32>
    %20 = math.rsqrt %19 : vector<8x1xf32>
    %21 = vector.broadcast %20 : vector<8x1xf32> to vector<8x256xf32>
    %22 = arith.mulf %17, %21 : vector<8x256xf32>
    %c0_9 = arith.constant 0 : index
    %c0_10 = arith.constant 0 : index
    %23 = vector.load %arg3[%c0_9, %c0_10] : memref<1x256xf32, #tpu.memory_space<vmem>>, vector<1x256xf32>
    %24 = vector.broadcast %23 : vector<1x256xf32> to vector<8x256xf32>
    %25 = arith.mulf %22, %24 : vector<8x256xf32>
    %c0_11 = arith.constant 0 : index
    %c0_12 = arith.constant 0 : index
    %26 = vector.load %arg4[%c0_11, %c0_12] : memref<1x256xf32, #tpu.memory_space<vmem>>, vector<1x256xf32>
    %27 = vector.broadcast %26 : vector<1x256xf32> to vector<8x256xf32>
    %28 = arith.addf %25, %27 : vector<8x256xf32>
    %cst_13 = arith.constant 0.000000e+00 : f32
    %29 = vector.broadcast %cst_13 : f32 to vector<8x256xf32>
    %30 = arith.maximumf %28, %29 : vector<8x256xf32>
    %c0_14 = arith.constant 0 : index
    %c0_15 = arith.constant 0 : index
    %31 = vector.load %arg5[%c0_14, %c0_15] : memref<256x256xf32, #tpu.memory_space<vmem>>, vector<256x256xf32>
    %cst_16 = arith.constant dense<0.000000e+00> : vector<8x256xf32>
    %32 = tpu.matmul %30, %31, %cst_16 {dimension_numbers = #tpu.dot_dimension_numbers<[1], [0], [0], [1], [0, 0, 1, 1], [], []>} : vector<8x256xf32>, vector<256x256xf32>, vector<8x256xf32> -> vector<8x256xf32>
    %cst_17 = arith.constant dense<0.000000e+00> : vector<8xf32>
    %33 = vector.multi_reduction <add>, %32, %cst_17 [1] : vector<8x256xf32> to vector<8xf32>
    %34 = vector.shape_cast %33 : vector<8xf32> to vector<8x1xf32>
    %cst_18 = arith.constant 2.560000e+02 : f32
    %35 = vector.broadcast %cst_18 : f32 to vector<8x1xf32>
    %36 = arith.divf %34, %35 : vector<8x1xf32>
    %37 = arith.mulf %32, %32 : vector<8x256xf32>
    %cst_19 = arith.constant dense<0.000000e+00> : vector<8xf32>
    %38 = vector.multi_reduction <add>, %37, %cst_19 [1] : vector<8x256xf32> to vector<8xf32>
    %39 = vector.shape_cast %38 : vector<8xf32> to vector<8x1xf32>
    %cst_20 = arith.constant 2.560000e+02 : f32
    %40 = vector.broadcast %cst_20 : f32 to vector<8x1xf32>
    %41 = arith.divf %39, %40 : vector<8x1xf32>
    %42 = arith.mulf %36, %36 : vector<8x1xf32>
    %43 = arith.subf %41, %42 : vector<8x1xf32>
    %cst_21 = arith.constant 0.000000e+00 : f32
    %44 = vector.broadcast %cst_21 : f32 to vector<8x1xf32>
    %45 = arith.maximumf %43, %44 : vector<8x1xf32>
    %46 = vector.broadcast %36 : vector<8x1xf32> to vector<8x256xf32>
    %47 = arith.subf %32, %46 : vector<8x256xf32>
    %cst_22 = arith.constant 9.99999974E-6 : f32
    %48 = vector.broadcast %cst_22 : f32 to vector<8x1xf32>
    %49 = arith.addf %45, %48 : vector<8x1xf32>
    %50 = math.rsqrt %49 : vector<8x1xf32>
    %51 = vector.broadcast %50 : vector<8x1xf32> to vector<8x256xf32>
    %52 = arith.mulf %47, %51 : vector<8x256xf32>
    %c0_23 = arith.constant 0 : index
    %c0_24 = arith.constant 0 : index
    %53 = vector.load %arg6[%c0_23, %c0_24] : memref<1x256xf32, #tpu.memory_space<vmem>>, vector<1x256xf32>
    %54 = vector.broadcast %53 : vector<1x256xf32> to vector<8x256xf32>
    %55 = arith.mulf %52, %54 : vector<8x256xf32>
    %c0_25 = arith.constant 0 : index
    %c0_26 = arith.constant 0 : index
    %56 = vector.load %arg7[%c0_25, %c0_26] : memref<1x256xf32, #tpu.memory_space<vmem>>, vector<1x256xf32>
    %57 = vector.broadcast %56 : vector<1x256xf32> to vector<8x256xf32>
    %58 = arith.addf %55, %57 : vector<8x256xf32>
    %cst_27 = arith.constant 0.000000e+00 : f32
    %59 = vector.broadcast %cst_27 : f32 to vector<8x256xf32>
    %60 = arith.maximumf %58, %59 : vector<8x256xf32>
    %61 = arith.addf %60, %30 : vector<8x256xf32>
    %c0_28 = arith.constant 0 : index
    %c0_29 = arith.constant 0 : index
    %62 = vector.load %arg8[%c0_28, %c0_29] : memref<256x256xf32, #tpu.memory_space<vmem>>, vector<256x256xf32>
    %cst_30 = arith.constant dense<0.000000e+00> : vector<8x256xf32>
    %63 = tpu.matmul %61, %62, %cst_30 {dimension_numbers = #tpu.dot_dimension_numbers<[1], [0], [0], [1], [0, 0, 1, 1], [], []>} : vector<8x256xf32>, vector<256x256xf32>, vector<8x256xf32> -> vector<8x256xf32>
    %c0_31 = arith.constant 0 : index
    %c0_32 = arith.constant 0 : index
    %64 = vector.load %arg9[%c0_31, %c0_32] : memref<1x256xf32, #tpu.memory_space<vmem>>, vector<1x256xf32>
    %65 = vector.broadcast %64 : vector<1x256xf32> to vector<8x256xf32>
    %66 = arith.addf %63, %65 : vector<8x256xf32>
    %c0_33 = arith.constant 0 : index
    %c0_34 = arith.constant 0 : index
    %67 = vector.load %arg10[%c0_33, %c0_34] : memref<256x128xf32, #tpu.memory_space<vmem>>, vector<256x128xf32>
    %cst_35 = arith.constant dense<0.000000e+00> : vector<8x128xf32>
    %68 = tpu.matmul %66, %67, %cst_35 {dimension_numbers = #tpu.dot_dimension_numbers<[1], [0], [0], [1], [0, 0, 1, 1], [], []>} : vector<8x256xf32>, vector<256x128xf32>, vector<8x128xf32> -> vector<8x128xf32>
    %c0_36 = arith.constant 0 : index
    %c0_37 = arith.constant 0 : index
    %69 = vector.load %arg11[%c0_36, %c0_37] : memref<1x128xf32, #tpu.memory_space<vmem>>, vector<1x128xf32>
    %70 = vector.broadcast %69 : vector<1x128xf32> to vector<8x128xf32>
    %71 = arith.addf %68, %70 : vector<8x128xf32>
    %c0_38 = arith.constant 0 : index
    %c0_39 = arith.constant 0 : index
    %72 = vector.load %arg12[%c0_38, %c0_39] : memref<8x128xf32, #tpu.memory_space<vmem>>, vector<8x128xf32>
    tpu.vector_store %arg12[%c0_38, %c0_39], %71 {strides = array<i32>} : memref<8x128xf32, #tpu.memory_space<vmem>>, vector<8x128xf32>,
    return
  }
  func.func @transform_0(%arg0: i32) -> (i32, i32) {
    %c0_i32 = arith.constant 0 : i32
    %c0_i32_0 = arith.constant 0 : i32
    return %arg0, %c0_i32 : i32, i32
  }
  func.func @transform_1(%arg0: i32) -> (i32, i32) {
    %c0_i32 = arith.constant 0 : i32
    %c0_i32_0 = arith.constant 0 : i32
    %c0_i32_1 = arith.constant 0 : i32
    return %c0_i32, %c0_i32_0 : i32, i32
  }
  func.func @transform_2(%arg0: i32) -> (i32, i32) {
    %c0_i32 = arith.constant 0 : i32
    %c0_i32_0 = arith.constant 0 : i32
    %c0_i32_1 = arith.constant 0 : i32
    return %c0_i32, %c0_i32_0 : i32, i32
  }
  func.func @transform_3(%arg0: i32) -> (i32, i32) {
    %c0_i32 = arith.constant 0 : i32
    %c0_i32_0 = arith.constant 0 : i32
    %c0_i32_1 = arith.constant 0 : i32
    return %c0_i32, %c0_i32_0 : i32, i32
  }
  func.func @transform_4(%arg0: i32) -> (i32, i32) {
    %c0_i32 = arith.constant 0 : i32
    %c0_i32_0 = arith.constant 0 : i32
    %c0_i32_1 = arith.constant 0 : i32
    return %c0_i32, %c0_i32_0 : i32, i32
  }
  func.func @transform_5(%arg0: i32) -> (i32, i32) {
    %c0_i32 = arith.constant 0 : i32
    %c0_i32_0 = arith.constant 0 : i32
    %c0_i32_1 = arith.constant 0 : i32
    return %c0_i32, %c0_i32_0 : i32, i32
  }
  func.func @transform_6(%arg0: i32) -> (i32, i32) {
    %c0_i32 = arith.constant 0 : i32
    %c0_i32_0 = arith.constant 0 : i32
    %c0_i32_1 = arith.constant 0 : i32
    return %c0_i32, %c0_i32_0 : i32, i32
  }
  func.func @transform_7(%arg0: i32) -> (i32, i32) {
    %c0_i32 = arith.constant 0 : i32
    %c0_i32_0 = arith.constant 0 : i32
    %c0_i32_1 = arith.constant 0 : i32
    return %c0_i32, %c0_i32_0 : i32, i32
  }
  func.func @transform_8(%arg0: i32) -> (i32, i32) {
    %c0_i32 = arith.constant 0 : i32
    %c0_i32_0 = arith.constant 0 : i32
    %c0_i32_1 = arith.constant 0 : i32
    return %c0_i32, %c0_i32_0 : i32, i32
  }
  func.func @transform_9(%arg0: i32) -> (i32, i32) {
    %c0_i32 = arith.constant 0 : i32
    %c0_i32_0 = arith.constant 0 : i32
    %c0_i32_1 = arith.constant 0 : i32
    return %c0_i32, %c0_i32_0 : i32, i32
  }
  func.func @transform_10(%arg0: i32) -> (i32, i32) {
    %c0_i32 = arith.constant 0 : i32
    %c0_i32_0 = arith.constant 0 : i32
    %c0_i32_1 = arith.constant 0 : i32
    return %c0_i32, %c0_i32_0 : i32, i32
  }
  func.func @transform_11(%arg0: i32) -> (i32, i32) {
    %c0_i32 = arith.constant 0 : i32
    %c0_i32_0 = arith.constant 0 : i32
    return %arg0, %c0_i32 : i32, i32
  }
}

</mosaic_0001>

<llo_original>
// kernel: tpu_custom_call.1
$region0: #{tpu_custom_call.1}
  #allocation0 [shape = 'u32[]', space=smem, size = 0x4, offset = 0x4, fixed_abs, tag = 'smem constant byte address 0x4 - core index']
  #allocation1 [shape = 'u32[72,128]{1,0:T(1,128)}', space=vmem, size = 0x9000, scoped, tag = 'internal scratch']
  %s0 = inlined_call_operand.hbm [shape: f32[16,256], index: 0, kind: input, shape index: {}]
  %s1 = inlined_call_operand.hbm [shape: f32[256,256], index: 1, kind: input, shape index: {}]
  %s2 = inlined_call_operand.hbm [shape: f32[1,256], index: 2, kind: input, shape index: {}]
  %s3 = inlined_call_operand.vmem [shape: f32[1,256], index: 3, kind: input, shape index: {}]
  %s4 = inlined_call_operand.hbm [shape: f32[256,256], index: 4, kind: input, shape index: {}]
  %s5 = inlined_call_operand.vmem [shape: f32[1,256], index: 5, kind: input, shape index: {}]
  %s6 = inlined_call_operand.hbm [shape: f32[1,256], index: 6, kind: input, shape index: {}]
  %s7 = inlined_call_operand.hbm [shape: f32[256,256], index: 7, kind: input, shape index: {}]
  %s8 = inlined_call_operand.vmem [shape: f32[1,256], index: 8, kind: input, shape index: {}]
  %s9 = inlined_call_operand.hbm [shape: f32[256,128], index: 9, kind: input, shape index: {}]
  %s10 = inlined_call_operand.vmem [shape: f32[1,128], index: 10, kind: input, shape index: {}]
  %s11 = inlined_call_operand.hbm [shape: f32[16,128], index: 11, kind: output, shape index: {}]
  %s12 = sld [smem:[#allocation0]]
  $region105: #{tpu_custom_call.1} parent=0
    _
  %s14 = ssub.s32 1, %s12
  %s15 = scalar_select 0, %s14, %s12
  $region1: #{tpu_custom_call.1} parent=0
    #allocation2 [shape = 'u8[16384]{0}', space=vmem, size = 0x4000, scoped, tag = 'input window, operand 0']
    #allocation3 [shape = 's32[2]{0}', space=sflag, size = 0x8, scoped, tag = 'scoped memory for tpu_custom_call.1']
    #allocation4 [shape = 's32[2]{0}', space=sflag, size = 0x8, scoped, tag = 'scoped memory for tpu_custom_call.1']
    #allocation5 [shape = 'u8[262144]{0}', space=vmem, size = 0x40000, scoped, tag = 'input window, operand 1, single buffered']
    #allocation6 [shape = 's32[1]{0}', space=sflag, size = 0x4, scoped, tag = 'scoped memory for tpu_custom_call.1']
    #allocation7 [shape = 'u8[1024]{0}', space=vmem, size = 0x400, scoped, tag = 'input window, operand 2, single buffered']
    #allocation8 [shape = 'u8[262144]{0}', space=vmem, size = 0x40000, scoped, tag = 'input window, operand 4, single buffered']
    #allocation9 [shape = 's32[1]{0}', space=sflag, size = 0x4, scoped, tag = 'scoped memory for tpu_custom_call.1']
    #allocation10 [shape = 'u8[1024]{0}', space=vmem, size = 0x400, scoped, tag = 'input window, operand 6, single buffered']
    #allocation11 [shape = 'u8[262144]{0}', space=vmem, size = 0x40000, scoped, tag = 'input window, operand 7, single buffered']
    #allocation12 [shape = 's32[1]{0}', space=sflag, size = 0x4, scoped, tag = 'scoped memory for tpu_custom_call.1']
    #allocation13 [shape = 'u8[131072]{0}', space=vmem, size = 0x20000, scoped, tag = 'input window, operand 9, single buffered']
    #allocation14 [shape = 'u8[8192]{0}', space=vmem, size = 0x2000, scoped, tag = 'output window, operand 0']
    %16 = vsyncpa [#allocation3], 0
    %s17 = scalar_lea.sflag [#allocation3], 1
    %18 = vsyncpa %s17, 0
    %19 = vsyncpa [#allocation6], 0
    %20 = vsyncpa [#allocation9], 0
    %21 = vsyncpa [#allocation12], 0
    %22 = vsyncpa [#allocation4], 0
    %s23 = scalar_lea.sflag [#allocation4], 1
    %24 = vsyncpa %s23, 0
    loop: start=0, step=1, limit=4
    $region2: #{tpu_custom_call.1} parent=1 // loop_pre_header
      _
    $region3: #{tpu_custom_call.1} parent=1 // loop_header
      %s26 = sphi 0, %s30
      %p27 = scmp.ge.s32.totalorder %s26, 4
      %s36 = sphi 0, %s38
      %s39 = sphi 0, %s36
      %s40 = sphi 0, %s39
      %s56 = sphi 0, %s40
      %s60 = sphi 0, %s60
      %s62 = sphi 0, %s60
      %s63 = sphi 0, %s62
      %s77 = sphi 0, %s63
      %s81 = sphi 0, %s81
      %s83 = sphi 0, %s81
      %s84 = sphi 0, %s83
      %s98 = sphi 0, %s84
      %s102 = sphi 0, %s102
      %s104 = sphi 0, %s102
      %s105 = sphi 0, %s104
      %s119 = sphi 0, %s105
      %s123 = sphi 0, %s123
      %s125 = sphi 0, %s123
      %s126 = sphi 0, %s125
      %s140 = sphi 0, %s126
      %s144 = sphi 0, %s144
      %s146 = sphi 0, %s144
      %s147 = sphi 0, %s146
      %s161 = sphi 0, %s147
      %s165 = sphi 0, %s165
      %s167 = sphi 0, %s165
      %s168 = sphi 0, %s167
      %s182 = sphi 0, %s168
      %s186 = sphi 0, %s186
      %s188 = sphi 0, %s186
      %s189 = sphi 0, %s188
      %s203 = sphi 0, %s189
      %s207 = sphi 0, %s207
      %s209 = sphi 0, %s207
      %s210 = sphi 0, %s209
      %s224 = sphi 0, %s210
      %s228 = sphi 0, %s228
      %s230 = sphi 0, %s228
      %s231 = sphi 0, %s230
      %s245 = sphi 0, %s231
      %s249 = sphi 0, %s249
      %s251 = sphi 0, %s249
      %s252 = sphi 0, %s251
      %s266 = sphi 0, %s252
      %s272 = sphi 0, %s274
      %s275 = sphi 0, %s272
      %s276 = sphi 0, %s275
      %s292 = sphi 0, %s276
    $region4: #{tpu_custom_call.1} parent=1 // loop_header_branch
      %29 = sbr.rel (%p27) target = $region8
    $region5: #{tpu_custom_call.1} parent=1 // loop_body
      %s31 = ssub.s32 %s26, 1
      %s32 = ssub.s32 %s26, 2
      %s33 = sadd.s32 %s26, 1
      %s34 = ssub.s32 %s26, %s33
      %p35 = scmp.eq.s32.totalorder %s34, 0
      %s37 = sadd.s32 %s36, 1
      %s38 = scalar_select %p35, %s36, %s37
      %p41 = pneg %p35
      %p42 = scmp.eq.s32.totalorder %s26, 1
      %p43 = por %p41, %p42
      %p44 = scmp.ne.s32.totalorder %s36, %s39
      %p45 = scmp.eq.s32.totalorder %s26, 0
      %p46 = por %p44, %p45
      %p47 = scmp.ne.s32.totalorder %s36, %s39
      %p48 = scmp.eq.s32.totalorder %s31, 1
      %p49 = por %p47, %p48
      %p50 = scmp.ne.s32.totalorder %s39, %s40
      %p51 = scmp.eq.s32.totalorder %s31, 0
      %p52 = por %p50, %p51
      %p53 = scmp.ne.s32.totalorder %s39, %s40
      %p54 = scmp.eq.s32.totalorder %s32, 1
      %p55 = por %p53, %p54
      %p57 = scmp.ne.s32.totalorder %s40, %s56
      %p58 = scmp.eq.s32.totalorder %s32, 0
      %p59 = por %p57, %p58
      %s61 = sadd.s32 %s60, 1
      %p64 = scmp.eq.s32.totalorder %s26, 1
      %p65 = scmp.ne.s32.totalorder %s60, %s62
      %p66 = scmp.eq.s32.totalorder %s26, 0
      %p67 = por %p65, %p66
      %p68 = scmp.ne.s32.totalorder %s60, %s62
      %p69 = scmp.eq.s32.totalorder %s31, 1
      %p70 = por %p68, %p69
      %p71 = scmp.ne.s32.totalorder %s62, %s63
      %p72 = scmp.eq.s32.totalorder %s31, 0
      %p73 = por %p71, %p72
      %p74 = scmp.ne.s32.totalorder %s62, %s63
      %p75 = scmp.eq.s32.totalorder %s32, 1
      %p76 = por %p74, %p75
      %p78 = scmp.ne.s32.totalorder %s63, %s77
      %p79 = scmp.eq.s32.totalorder %s32, 0
      %p80 = por %p78, %p79
      %s82 = sadd.s32 %s81, 1
      %p85 = scmp.eq.s32.totalorder %s26, 1
      %p86 = scmp.ne.s32.totalorder %s81, %s83
      %p87 = scmp.eq.s32.totalorder %s26, 0
      %p88 = por %p86, %p87
      %p89 = scmp.ne.s32.totalorder %s81, %s83
      %p90 = scmp.eq.s32.totalorder %s31, 1
      %p91 = por %p89, %p90
      %p92 = scmp.ne.s32.totalorder %s83, %s84
      %p93 = scmp.eq.s32.totalorder %s31, 0
      %p94 = por %p92, %p93
      %p95 = scmp.ne.s32.totalorder %s83, %s84
      %p96 = scmp.eq.s32.totalorder %s32, 1
      %p97 = por %p95, %p96
      %p99 = scmp.ne.s32.totalorder %s84, %s98
      %p100 = scmp.eq.s32.totalorder %s32, 0
      %p101 = por %p99, %p100
      %s103 = sadd.s32 %s102, 1
      %p106 = scmp.eq.s32.totalorder %s26, 1
      %p107 = scmp.ne.s32.totalorder %s102, %s104
      %p108 = scmp.eq.s32.totalorder %s26, 0
      %p109 = por %p107, %p108
      %p110 = scmp.ne.s32.totalorder %s102, %s104
      %p111 = scmp.eq.s32.totalorder %s31, 1
      %p112 = por %p110, %p111
      %p113 = scmp.ne.s32.totalorder %s104, %s105
      %p114 = scmp.eq.s32.totalorder %s31, 0
      %p115 = por %p113, %p114
      %p116 = scmp.ne.s32.totalorder %s104, %s105
      %p117 = scmp.eq.s32.totalorder %s32, 1
      %p118 = por %p116, %p117
      %p120 = scmp.ne.s32.totalorder %s105, %s119
      %p121 = scmp.eq.s32.totalorder %s32, 0
      %p122 = por %p120, %p121
      %s124 = sadd.s32 %s123, 1
      %p127 = scmp.eq.s32.totalorder %s26, 1
      %p128 = scmp.ne.s32.totalorder %s123, %s125
      %p129 = scmp.eq.s32.totalorder %s26, 0
      %p130 = por %p128, %p129
      %p131 = scmp.ne.s32.totalorder %s123, %s125
      %p132 = scmp.eq.s32.totalorder %s31, 1
      %p133 = por %p131, %p132
      %p134 = scmp.ne.s32.totalorder %s125, %s126
      %p135 = scmp.eq.s32.totalorder %s31, 0
      %p136 = por %p134, %p135
      %p137 = scmp.ne.s32.totalorder %s125, %s126
      %p138 = scmp.eq.s32.totalorder %s32, 1
      %p139 = por %p137, %p138
      %p141 = scmp.ne.s32.totalorder %s126, %s140
      %p142 = scmp.eq.s32.totalorder %s32, 0
      %p143 = por %p141, %p142
      %s145 = sadd.s32 %s144, 1
      %p148 = scmp.eq.s32.totalorder %s26, 1
      %p149 = scmp.ne.s32.totalorder %s144, %s146
      %p150 = scmp.eq.s32.totalorder %s26, 0
      %p151 = por %p149, %p150
      %p152 = scmp.ne.s32.totalorder %s144, %s146
      %p153 = scmp.eq.s32.totalorder %s31, 1
      %p154 = por %p152, %p153
      %p155 = scmp.ne.s32.totalorder %s146, %s147
      %p156 = scmp.eq.s32.totalorder %s31, 0
      %p157 = por %p155, %p156
      %p158 = scmp.ne.s32.totalorder %s146, %s147
      %p159 = scmp.eq.s32.totalorder %s32, 1
      %p160 = por %p158, %p159
      %p162 = scmp.ne.s32.totalorder %s147, %s161
      %p163 = scmp.eq.s32.totalorder %s32, 0
      %p164 = por %p162, %p163
      %s166 = sadd.s32 %s165, 1
      %p169 = scmp.eq.s32.totalorder %s26, 1
      %p170 = scmp.ne.s32.totalorder %s165, %s167
      %p171 = scmp.eq.s32.totalorder %s26, 0
      %p172 = por %p170, %p171
      %p173 = scmp.ne.s32.totalorder %s165, %s167
      %p174 = scmp.eq.s32.totalorder %s31, 1
      %p175 = por %p173, %p174
      %p176 = scmp.ne.s32.totalorder %s167, %s168
      %p177 = scmp.eq.s32.totalorder %s31, 0
      %p178 = por %p176, %p177
      %p179 = scmp.ne.s32.totalorder %s167, %s168
      %p180 = scmp.eq.s32.totalorder %s32, 1
      %p181 = por %p179, %p180
      %p183 = scmp.ne.s32.totalorder %s168, %s182
      %p184 = scmp.eq.s32.totalorder %s32, 0
      %p185 = por %p183, %p184
      %s187 = sadd.s32 %s186, 1
      %p190 = scmp.eq.s32.totalorder %s26, 1
      %p191 = scmp.ne.s32.totalorder %s186, %s188
      %p192 = scmp.eq.s32.totalorder %s26, 0
      %p193 = por %p191, %p192
      %p194 = scmp.ne.s32.totalorder %s186, %s188
      %p195 = scmp.eq.s32.totalorder %s31, 1
      %p196 = por %p194, %p195
      %p197 = scmp.ne.s32.totalorder %s188, %s189
      %p198 = scmp.eq.s32.totalorder %s31, 0
      %p199 = por %p197, %p198
      %p200 = scmp.ne.s32.totalorder %s188, %s189
      %p201 = scmp.eq.s32.totalorder %s32, 1
      %p202 = por %p200, %p201
      %p204 = scmp.ne.s32.totalorder %s189, %s203
      %p205 = scmp.eq.s32.totalorder %s32, 0
      %p206 = por %p204, %p205
      %s208 = sadd.s32 %s207, 1
      %p211 = scmp.eq.s32.totalorder %s26, 1
      %p212 = scmp.ne.s32.totalorder %s207, %s209
      %p213 = scmp.eq.s32.totalorder %s26, 0
      %p214 = por %p212, %p213
      %p215 = scmp.ne.s32.totalorder %s207, %s209
      %p216 = scmp.eq.s32.totalorder %s31, 1
      %p217 = por %p215, %p216
      %p218 = scmp.ne.s32.totalorder %s209, %s210
      %p219 = scmp.eq.s32.totalorder %s31, 0
      %p220 = por %p218, %p219
      %p221 = scmp.ne.s32.totalorder %s209, %s210
      %p222 = scmp.eq.s32.totalorder %s32, 1
      %p223 = por %p221, %p222
      %p225 = scmp.ne.s32.totalorder %s210, %s224
      %p226 = scmp.eq.s32.totalorder %s32, 0
      %p227 = por %p225, %p226
      %s229 = sadd.s32 %s228, 1
      %p232 = scmp.eq.s32.totalorder %s26, 1
      %p233 = scmp.ne.s32.totalorder %s228, %s230
      %p234 = scmp.eq.s32.totalorder %s26, 0
      %p235 = por %p233, %p234
      %p236 = scmp.ne.s32.totalorder %s228, %s230
      %p237 = scmp.eq.s32.totalorder %s31, 1
      %p238 = por %p236, %p237
      %p239 = scmp.ne.s32.totalorder %s230, %s231
      %p240 = scmp.eq.s32.totalorder %s31, 0
      %p241 = por %p239, %p240
      %p242 = scmp.ne.s32.totalorder %s230, %s231
      %p243 = scmp.eq.s32.totalorder %s32, 1
      %p244 = por %p242, %p243
      %p246 = scmp.ne.s32.totalorder %s231, %s245
      %p247 = scmp.eq.s32.totalorder %s32, 0
      %p248 = por %p246, %p247
      %s250 = sadd.s32 %s249, 1
      %p253 = scmp.eq.s32.totalorder %s26, 1
      %p254 = scmp.ne.s32.totalorder %s249, %s251
      %p255 = scmp.eq.s32.totalorder %s26, 0
      %p256 = por %p254, %p255
      %p257 = scmp.ne.s32.totalorder %s249, %s251
      %p258 = scmp.eq.s32.totalorder %s31, 1
      %p259 = por %p257, %p258
      %p260 = scmp.ne.s32.totalorder %s251, %s252
      %p261 = scmp.eq.s32.totalorder %s31, 0
      %p262 = por %p260, %p261
      %p263 = scmp.ne.s32.totalorder %s251, %s252
      %p264 = scmp.eq.s32.totalorder %s32, 1
      %p265 = por %p263, %p264
      %p267 = scmp.ne.s32.totalorder %s252, %s266
      %p268 = scmp.eq.s32.totalorder %s32, 0
      %p269 = por %p267, %p268
      %s270 = ssub.s32 %s26, %s33
      %p271 = scmp.eq.s32.totalorder %s270, 0
      %s273 = sadd.s32 %s272, 1
      %s274 = scalar_select %p271, %s272, %s273
      %p277 = pneg %p271
      %p278 = scmp.eq.s32.totalorder %s26, 1
      %p279 = por %p277, %p278
      %p280 = scmp.ne.s32.totalorder %s272, %s275
      %p281 = scmp.eq.s32.totalorder %s26, 0
      %p282 = por %p280, %p281
      %p283 = scmp.ne.s32.totalorder %s272, %s275
      %p284 = scmp.eq.s32.totalorder %s31, 1
      %p285 = por %p283, %p284
      %p286 = scmp.ne.s32.totalorder %s275, %s276
      %p287 = scmp.eq.s32.totalorder %s31, 0
      %p288 = por %p286, %p287
      %p289 = scmp.ne.s32.totalorder %s275, %s276
      %p290 = scmp.eq.s32.totalorder %s32, 1
      %p291 = por %p289, %p290
      %p293 = scmp.ne.s32.totalorder %s276, %s292
      %p294 = scmp.eq.s32.totalorder %s32, 0
      %p295 = por %p293, %p294
      %p296 = scmp.le.s32.totalorder 1, %s26
      %p297 = scmp.lt.s32.totalorder %s26, 3
      %p298 = pnand %p296, %p297
      %p299 = pneg %p298
      // Predicated region
      $region9: #{tpu_custom_call.1} parent=5 // pred_check
        _
      $region10: #{tpu_custom_call.1} parent=5 // pred_check_branch
        %301 = sbr.rel (%p298) target = $region12
      $region11: #{tpu_custom_call.1} parent=5 // pred_region
        %s302 = ssub.s32 %s26, 1
        // Predicated region
        $region13: #{tpu_custom_call.1} parent=11 // pred_check
          %p303 = pneg %p73
        $region14: #{tpu_custom_call.1} parent=11 // pred_check_branch
          %305 = sbr.rel (%p303) target = $region16
        $region15: #{tpu_custom_call.1} parent=11 // pred_region
          %307 = vsyncadd [#allocation6], 0
          %s308 = sshll.u32 %s1, 4
          %s309 = int_to_ptr.hbm [resolvable:$true] %s308
          %s310 = sshll.u32 [#allocation5], 4
          %s311 = int_to_ptr.vmem [resolvable:$true] %s310
          %316 = dma.hbm_to_vmem [thread:$0]  %s309, 8192, %s311, [#allocation6], 256, 256, 16
        $region16: #{tpu_custom_call.1} parent=11 // pred_fallthru
          _
        // Predicated region
        $region17: #{tpu_custom_call.1} parent=11 // pred_check
          %p317 = pneg %p94
        $region18: #{tpu_custom_call.1} parent=11 // pred_check_branch
          %319 = sbr.rel (%p317) target = $region20
        $region19: #{tpu_custom_call.1} parent=11 // pred_region
          %321 = vsyncadd [#allocation6], 0
          %s323 = sshll.u32 %s2, 4
          %s324 = int_to_ptr.hbm [resolvable:$true] %s323
          %s325 = sshll.u32 [#allocation7], 4
          %s326 = int_to_ptr.vmem [resolvable:$true] %s325
          %328 = dma.hbm_to_vmem [thread:$0]  %s324, 32, %s326, [#allocation6]
        $region20: #{tpu_custom_call.1} parent=11 // pred_fallthru
          _
        // Predicated region
        $region21: #{tpu_custom_call.1} parent=11 // pred_check
          %p329 = pneg %p115
        $region22: #{tpu_custom_call.1} parent=11 // pred_check_branch
          %331 = sbr.rel (%p329) target = $region24
        $region23: #{tpu_custom_call.1} parent=11 // pred_region
          _
        $region24: #{tpu_custom_call.1} parent=11 // pred_fallthru
          _
        // Predicated region
        $region25: #{tpu_custom_call.1} parent=11 // pred_check
          %p332 = pneg %p136
        $region26: #{tpu_custom_call.1} parent=11 // pred_check_branch
          %334 = sbr.rel (%p332) target = $region28
        $region27: #{tpu_custom_call.1} parent=11 // pred_region
          %336 = vsyncadd [#allocation9], 0
          %s337 = sshll.u32 %s4, 4
          %s338 = int_to_ptr.hbm [resolvable:$true] %s337
          %s339 = sshll.u32 [#allocation8], 4
          %s340 = int_to_ptr.vmem [resolvable:$true] %s339
          %345 = dma.hbm_to_vmem [thread:$0]  %s338, 8192, %s340, [#allocation9], 256, 256, 16
        $region28: #{tpu_custom_call.1} parent=11 // pred_fallthru
          _
        // Predicated region
        $region29: #{tpu_custom_call.1} parent=11 // pred_check
          %p346 = pneg %p157
        $region30: #{tpu_custom_call.1} parent=11 // pred_check_branch
          %348 = sbr.rel (%p346) target = $region32
        $region31: #{tpu_custom_call.1} parent=11 // pred_region
          _
        $region32: #{tpu_custom_call.1} parent=11 // pred_fallthru
          _
        // Predicated region
        $region33: #{tpu_custom_call.1} parent=11 // pred_check
          %p349 = pneg %p178
        $region34: #{tpu_custom_call.1} parent=11 // pred_check_branch
          %351 = sbr.rel (%p349) target = $region36
        $region35: #{tpu_custom_call.1} parent=11 // pred_region
          %353 = vsyncadd [#allocation9], 0
          %s355 = sshll.u32 %s6, 4
          %s356 = int_to_ptr.hbm [resolvable:$true] %s355
          %s357 = sshll.u32 [#allocation10], 4
          %s358 = int_to_ptr.vmem [resolvable:$true] %s357
          %360 = dma.hbm_to_vmem [thread:$0]  %s356, 32, %s358, [#allocation9]
        $region36: #{tpu_custom_call.1} parent=11 // pred_fallthru
          _
        // Predicated region
        $region37: #{tpu_custom_call.1} parent=11 // pred_check
          %p361 = pneg %p199
        $region38: #{tpu_custom_call.1} parent=11 // pred_check_branch
          %363 = sbr.rel (%p361) target = $region40
        $region39: #{tpu_custom_call.1} parent=11 // pred_region
          %365 = vsyncadd [#allocation12], 0
          %s366 = sshll.u32 %s7, 4
          %s367 = int_to_ptr.hbm [resolvable:$true] %s366
          %s368 = sshll.u32 [#allocation11], 4
          %s369 = int_to_ptr.vmem [resolvable:$true] %s368
          %374 = dma.hbm_to_vmem [thread:$0]  %s367, 8192, %s369, [#allocation12], 256, 256, 16
        $region40: #{tpu_custom_call.1} parent=11 // pred_fallthru
          _
        // Predicated region
        $region41: #{tpu_custom_call.1} parent=11 // pred_check
          %p375 = pneg %p220
        $region42: #{tpu_custom_call.1} parent=11 // pred_check_branch
          %377 = sbr.rel (%p375) target = $region44
        $region43: #{tpu_custom_call.1} parent=11 // pred_region
          _
        $region44: #{tpu_custom_call.1} parent=11 // pred_fallthru
          _
        // Predicated region
        $region45: #{tpu_custom_call.1} parent=11 // pred_check
          %p378 = pneg %p241
        $region46: #{tpu_custom_call.1} parent=11 // pred_check_branch
          %380 = sbr.rel (%p378) target = $region48
        $region47: #{tpu_custom_call.1} parent=11 // pred_region
          %382 = vsyncadd [#allocation12], 0
          %s383 = sshll.u32 %s9, 4
          %s384 = int_to_ptr.hbm [resolvable:$true] %s383
          %s385 = sshll.u32 [#allocation13], 4
          %s386 = int_to_ptr.vmem [resolvable:$true] %s385
          %391 = dma.hbm_to_vmem [thread:$0]  %s384, 4096, %s386, [#allocation12], 128, 128, 8
        $region48: #{tpu_custom_call.1} parent=11 // pred_fallthru
          _
        // Predicated region
        $region49: #{tpu_custom_call.1} parent=11 // pred_check
          %p392 = pneg %p262
        $region50: #{tpu_custom_call.1} parent=11 // pred_check_branch
          %394 = sbr.rel (%p392) target = $region52
        $region51: #{tpu_custom_call.1} parent=11 // pred_region
          _
        $region52: #{tpu_custom_call.1} parent=11 // pred_fallthru
          _
      $region12: #{tpu_custom_call.1} parent=5 // pred_fallthru
        _
      %p395 = scmp.lt.s32.totalorder %s26, 2
      // Predicated region
      $region53: #{tpu_custom_call.1} parent=5 // pred_check
        %p396 = pneg %p395
      $region54: #{tpu_custom_call.1} parent=5 // pred_check_branch
        %398 = sbr.rel (%p396) target = $region56
      $region55: #{tpu_custom_call.1} parent=5 // pred_region
        // Predicated region
        $region57: #{tpu_custom_call.1} parent=55 // pred_check
          %p399 = pneg %p46
        $region58: #{tpu_custom_call.1} parent=55 // pred_check_branch
          %401 = sbr.rel (%p399) target = $region60
        $region59: #{tpu_custom_call.1} parent=55 // pred_region
          %s402 = sand.u32 %s36, 1
          %s403 = scalar_lea.sflag [#allocation3], %s402
          %s404 = sand.u32 %s36, 1
          %s405 = smul.addr %s404, 16
          %s406 = scalar_lea.vmem [#allocation2], %s405
          %408 = vsyncadd %s403, 0
          %s409 = smul.addr %s26, 2
          %s410 = smul.addr %s409, 8
          %s411 = scalar_lea.hbm %s0, %s410
          %s413 = sshll.u32 %s411, 4
          %s414 = int_to_ptr.hbm [resolvable:$true] %s413
          %s415 = sshll.u32 %s406, 4
          %s416 = int_to_ptr.vmem [resolvable:$true] %s415
          %418 = dma.hbm_to_vmem [thread:$0]  %s414, 256, %s416, %s403
        $region60: #{tpu_custom_call.1} parent=55 // pred_fallthru
          _
      $region56: #{tpu_custom_call.1} parent=5 // pred_fallthru
        _
      %p419 = scmp.le.s32.totalorder 1, %s26
      %p420 = scmp.lt.s32.totalorder %s26, 3
      %p421 = pnand %p419, %p420
      %p422 = pneg %p421
      // Predicated region
      $region61: #{tpu_custom_call.1} parent=5 // pred_check
        _
      $region62: #{tpu_custom_call.1} parent=5 // pred_check_branch
        %424 = sbr.rel (%p421) target = $region64
      $region63: #{tpu_custom_call.1} parent=5 // pred_region
        %s425 = ssub.s32 %s26, 1
        %s426 = sand.u32 %s39, 1
        %s427 = scalar_lea.sflag [#allocation3], %s426
        %s428 = sand.u32 %s39, 1
        %s429 = smul.addr %s428, 16
        %s430 = scalar_lea.vmem [#allocation2], %s429
        // Predicated region
        $region65: #{tpu_custom_call.1} parent=63 // pred_check
          %p431 = pneg %p52
        $region66: #{tpu_custom_call.1} parent=63 // pred_check_branch
          %433 = sbr.rel (%p431) target = $region68
        $region67: #{tpu_custom_call.1} parent=63 // pred_region
          %435 = dma.done %s427, 256
        $region68: #{tpu_custom_call.1} parent=63 // pred_fallthru
          _
        // Predicated region
        $region69: #{tpu_custom_call.1} parent=63 // pred_check
          %p436 = pneg %p73
        $region70: #{tpu_custom_call.1} parent=63 // pred_check_branch
          %438 = sbr.rel (%p436) target = $region72
        $region71: #{tpu_custom_call.1} parent=63 // pred_region
          %440 = dma.done [#allocation6], 8192
        $region72: #{tpu_custom_call.1} parent=63 // pred_fallthru
          _
        // Predicated region
        $region73: #{tpu_custom_call.1} parent=63 // pred_check
          %p441 = pneg %p94
        $region74: #{tpu_custom_call.1} parent=63 // pred_check_branch
          %443 = sbr.rel (%p441) target = $region76
        $region75: #{tpu_custom_call.1} parent=63 // pred_region
          %445 = dma.done [#allocation6], 32
        $region76: #{tpu_custom_call.1} parent=63 // pred_fallthru
          _
        // Predicated region
        $region77: #{tpu_custom_call.1} parent=63 // pred_check
          %p446 = pneg %p136
        $region78: #{tpu_custom_call.1} parent=63 // pred_check_branch
          %448 = sbr.rel (%p446) target = $region80
        $region79: #{tpu_custom_call.1} parent=63 // pred_region
          %450 = dma.done [#allocation9], 8192
        $region80: #{tpu_custom_call.1} parent=63 // pred_fallthru
          _
        // Predicated region
        $region81: #{tpu_custom_call.1} parent=63 // pred_check
          %p451 = pneg %p178
        $region82: #{tpu_custom_call.1} parent=63 // pred_check_branch
          %453 = sbr.rel (%p451) target = $region84
        $region83: #{tpu_custom_call.1} parent=63 // pred_region
          %455 = dma.done [#allocation9], 32
        $region84: #{tpu_custom_call.1} parent=63 // pred_fallthru
          _
        // Predicated region
        $region85: #{tpu_custom_call.1} parent=63 // pred_check
          %p456 = pneg %p199
        $region86: #{tpu_custom_call.1} parent=63 // pred_check_branch
          %458 = sbr.rel (%p456) target = $region88
        $region87: #{tpu_custom_call.1} parent=63 // pred_region
          %460 = dma.done [#allocation12], 8192
        $region88: #{tpu_custom_call.1} parent=63 // pred_fallthru
          _
        // Predicated region
        $region89: #{tpu_custom_call.1} parent=63 // pred_check
          %p461 = pneg %p241
        $region90: #{tpu_custom_call.1} parent=63 // pred_check_branch
          %463 = sbr.rel (%p461) target = $region92
        $region91: #{tpu_custom_call.1} parent=63 // pred_region
          %465 = dma.done [#allocation12], 4096
        $region92: #{tpu_custom_call.1} parent=63 // pred_fallthru
          _
        %s466 = sand.u32 %s39, 1
        %s467 = scalar_lea.sflag [#allocation3], %s466
        %s468 = sand.u32 %s39, 1
        %s469 = smul.addr %s468, 16
        %s470 = scalar_lea.vmem [#allocation2], %s469
        %p471 = pneg %p52
        %p472 = pneg %p49
        %p473 = pneg %p73
        %p474 = pneg %p70
        %p475 = pneg %p94
        %p476 = pneg %p91
        %p477 = pneg %p115
        %p478 = pneg %p112
        %p479 = pneg %p136
        %p480 = pneg %p133
        %p481 = pneg %p157
        %p482 = pneg %p154
        %p483 = pneg %p178
        %p484 = pneg %p175
        %p485 = pneg %p199
        %p486 = pneg %p196
        %p487 = pneg %p220
        %p488 = pneg %p217
        %p489 = pneg %p241
        %p490 = pneg %p238
        %p491 = pneg %p262
        %p492 = pneg %p259
        %p493 = pneg %p288
        %p494 = pneg %p285
        %s495 = sand.u32 %s275, 1
        %s496 = scalar_lea.sflag [#allocation4], %s495
        %s497 = sand.u32 %s275, 1
        %s498 = smul.addr %s497, 8
        %s499 = scalar_lea.vmem [#allocation14], %s498
        %v500 = vld [vmem:[%s430] sm:$0xff]
        %v501 = vld [vmem:[%s430 + $0x8] sm:$0xff]
        %v502 = vld [vmem:[#allocation5] sm:$0xff]
        %v503 = vld [vmem:[#allocation5 + $0x8] sm:$0xff]
        %v504 = vld [vmem:[#allocation5 + $0x10] sm:$0xff]
        %v505 = vld [vmem:[#allocation5 + $0x18] sm:$0xff]
        %v506 = vld [vmem:[#allocation5 + $0x20] sm:$0xff]
        %v507 = vld [vmem:[#allocation5 + $0x28] sm:$0xff]
        %v508 = vld [vmem:[#allocation5 + $0x30] sm:$0xff]
        %v509 = vld [vmem:[#allocation5 + $0x38] sm:$0xff]
        %v510 = vld [vmem:[#allocation5 + $0x40] sm:$0xff]
        %v511 = vld [vmem:[#allocation5 + $0x48] sm:$0xff]
        %v512 = vld [vmem:[#allocation5 + $0x50] sm:$0xff]
        %v513 = vld [vmem:[#allocation5 + $0x58] sm:$0xff]
        %v514 = vld [vmem:[#allocation5 + $0x60] sm:$0xff]
        %v515 = vld [vmem:[#allocation5 + $0x68] sm:$0xff]
        %v516 = vld [vmem:[#allocation5 + $0x70] sm:$0xff]
        %v517 = vld [vmem:[#allocation5 + $0x78] sm:$0xff]
        %v518 = vld [vmem:[#allocation5 + $0x80] sm:$0xff]
        %v519 = vld [vmem:[#allocation5 + $0x88] sm:$0xff]
        %v520 = vld [vmem:[#allocation5 + $0x90] sm:$0xff]
        %v521 = vld [vmem:[#allocation5 + $0x98] sm:$0xff]
        %v522 = vld [vmem:[#allocation5 + $0xa0] sm:$0xff]
        %v523 = vld [vmem:[#allocation5 + $0xa8] sm:$0xff]
        %v524 = vld [vmem:[#allocation5 + $0xb0] sm:$0xff]
        %v525 = vld [vmem:[#allocation5 + $0xb8] sm:$0xff]
        %v526 = vld [vmem:[#allocation5 + $0xc0] sm:$0xff]
        %v527 = vld [vmem:[#allocation5 + $0xc8] sm:$0xff]
        %v528 = vld [vmem:[#allocation5 + $0xd0] sm:$0xff]
        %v529 = vld [vmem:[#allocation5 + $0xd8] sm:$0xff]
        %v530 = vld [vmem:[#allocation5 + $0xe0] sm:$0xff]
        %v531 = vld [vmem:[#allocation5 + $0xe8] sm:$0xff]
        %v532 = vld [vmem:[#allocation5 + $0xf0] sm:$0xff]
        %v533 = vld [vmem:[#allocation5 + $0xf8] sm:$0xff]
        %v534 = vld [vmem:[#allocation5 + $0x100] sm:$0xff]
        %v535 = vld [vmem:[#allocation5 + $0x108] sm:$0xff]
        %v536 = vld [vmem:[#allocation5 + $0x110] sm:$0xff]
        %v537 = vld [vmem:[#allocation5 + $0x118] sm:$0xff]
        %v538 = vld [vmem:[#allocation5 + $0x120] sm:$0xff]
        %v539 = vld [vmem:[#allocation5 + $0x128] sm:$0xff]
        %v540 = vld [vmem:[#allocation5 + $0x130] sm:$0xff]
        %v541 = vld [vmem:[#allocation5 + $0x138] sm:$0xff]
        %v542 = vld [vmem:[#allocation5 + $0x140] sm:$0xff]
        %v543 = vld [vmem:[#allocation5 + $0x148] sm:$0xff]
        %v544 = vld [vmem:[#allocation5 + $0x150] sm:$0xff]
        %v545 = vld [vmem:[#allocation5 + $0x158] sm:$0xff]
        %v546 = vld [vmem:[#allocation5 + $0x160] sm:$0xff]
        %v547 = vld [vmem:[#allocation5 + $0x168] sm:$0xff]
        %v548 = vld [vmem:[#allocation5 + $0x170] sm:$0xff]
        %v549 = vld [vmem:[#allocation5 + $0x178] sm:$0xff]
        %v550 = vld [vmem:[#allocation5 + $0x180] sm:$0xff]
        %v551 = vld [vmem:[#allocation5 + $0x188] sm:$0xff]
        %v552 = vld [vmem:[#allocation5 + $0x190] sm:$0xff]
        %v553 = vld [vmem:[#allocation5 + $0x198] sm:$0xff]
        %v554 = vld [vmem:[#allocation5 + $0x1a0] sm:$0xff]
        %v555 = vld [vmem:[#allocation5 + $0x1a8] sm:$0xff]
        %v556 = vld [vmem:[#allocation5 + $0x1b0] sm:$0xff]
        %v557 = vld [vmem:[#allocation5 + $0x1b8] sm:$0xff]
        %v558 = vld [vmem:[#allocation5 + $0x1c0] sm:$0xff]
        %v559 = vld [vmem:[#allocation5 + $0x1c8] sm:$0xff]
        %v560 = vld [vmem:[#allocation5 + $0x1d0] sm:$0xff]
        %v561 = vld [vmem:[#allocation5 + $0x1d8] sm:$0xff]
        %v562 = vld [vmem:[#allocation5 + $0x1e0] sm:$0xff]
        %v563 = vld [vmem:[#allocation5 + $0x1e8] sm:$0xff]
        %v564 = vld [vmem:[#allocation5 + $0x1f0] sm:$0xff]
        %v565 = vld [vmem:[#allocation5 + $0x1f8] sm:$0xff]
        %566 = vmatpush.msra.mxu0 %v532
        %567 = vmatpush.msra.mxu0 %v530
        %568 = vmatpush.msra.mxu0 %v528
        %569 = vmatpush.msra.mxu0 %v526
        %570 = vmatpush.msra.mxu0 %v524
        %571 = vmatpush.msra.mxu0 %v522
        %572 = vmatpush.msra.mxu0 %v520
        %573 = vmatpush.msra.mxu0 %v518
        %574 = vmatpush.msra.mxu0 %v516
        %575 = vmatpush.msra.mxu0 %v514
        %576 = vmatpush.msra.mxu0 %v512
        %577 = vmatpush.msra.mxu0 %v510
        %578 = vmatpush.msra.mxu0 %v508
        %579 = vmatpush.msra.mxu0 %v506
        %580 = vmatpush.msra.mxu0 %v504
        %581 = vmatpush.msra.mxu0 %v502
        %582 = vmatmul.f32.gmra.mxu0 %v500
        %v583 = vpop.f32.mrf.mxu0
        %v584 = vadd.f32 0.0, %v583
        %585 = vdwg.mxu0
        %586 = vmatpush.msra.mxu0 %v564
        %587 = vmatpush.msra.mxu0 %v562
        %588 = vmatpush.msra.mxu0 %v560
        %589 = vmatpush.msra.mxu0 %v558
        %590 = vmatpush.msra.mxu0 %v556
        %591 = vmatpush.msra.mxu0 %v554
        %592 = vmatpush.msra.mxu0 %v552
        %593 = vmatpush.msra.mxu0 %v550
        %594 = vmatpush.msra.mxu0 %v548
        %595 = vmatpush.msra.mxu0 %v546
        %596 = vmatpush.msra.mxu0 %v544
        %597 = vmatpush.msra.mxu0 %v542
        %598 = vmatpush.msra.mxu0 %v540
        %599 = vmatpush.msra.mxu0 %v538
        %600 = vmatpush.msra.mxu0 %v536
        %601 = vmatpush.msra.mxu0 %v534
        %602 = vmatmul.f32.gmra.mxu0 %v501
        %v603 = vpop.f32.mrf.mxu0
        %v604 = vadd.f32 %v584, %v603
        %605 = vdwg.mxu0
        %606 = vmatpush.msra.mxu0 %v533
        %607 = vmatpush.msra.mxu0 %v531
        %608 = vmatpush.msra.mxu0 %v529
        %609 = vmatpush.msra.mxu0 %v527
        %610 = vmatpush.msra.mxu0 %v525
        %611 = vmatpush.msra.mxu0 %v523
        %612 = vmatpush.msra.mxu0 %v521
        %613 = vmatpush.msra.mxu0 %v519
        %614 = vmatpush.msra.mxu0 %v517
        %615 = vmatpush.msra.mxu0 %v515
        %616 = vmatpush.msra.mxu0 %v513
        %617 = vmatpush.msra.mxu0 %v511
        %618 = vmatpush.msra.mxu0 %v509
        %619 = vmatpush.msra.mxu0 %v507
        %620 = vmatpush.msra.mxu0 %v505
        %621 = vmatpush.msra.mxu0 %v503
        %622 = vmatmul.f32.gmra.mxu0 %v500
        %v623 = vpop.f32.mrf.mxu0
        %v624 = vadd.f32 0.0, %v623
        %625 = vdwg.mxu0
        %626 = vmatpush.msra.mxu0 %v565
        %627 = vmatpush.msra.mxu0 %v563
        %628 = vmatpush.msra.mxu0 %v561
        %629 = vmatpush.msra.mxu0 %v559
        %630 = vmatpush.msra.mxu0 %v557
        %631 = vmatpush.msra.mxu0 %v555
        %632 = vmatpush.msra.mxu0 %v553
        %633 = vmatpush.msra.mxu0 %v551
        %634 = vmatpush.msra.mxu0 %v549
        %635 = vmatpush.msra.mxu0 %v547
        %636 = vmatpush.msra.mxu0 %v545
        %637 = vmatpush.msra.mxu0 %v543
        %638 = vmatpush.msra.mxu0 %v541
        %639 = vmatpush.msra.mxu0 %v539
        %640 = vmatpush.msra.mxu0 %v537
        %641 = vmatpush.msra.mxu0 %v535
        %642 = vmatmul.f32.gmra.mxu0 %v501
        %v643 = vpop.f32.mrf.mxu0
        %v644 = vadd.f32 %v624, %v643
        %645 = vdwg.mxu0
        %v646 = vadd.f32 %v604, %v644
        %647 = vadd.xlane.f32.xlu0 %v646
        %v648 = vpop.xlane.xlu0 %647
        %v649 = vrcp.pop 256.0
        %v650 = vmul.f32 256.0, %v649
        %v651 = vsub.f32 1.0, %v650
        %v652 = vmul.f32 %v649, %v651
        %v653 = vadd.f32 %v649, %v652
        %vm654 = vweird.f32 %v649
        %v655 = vsel %vm654, %v649, %v653
        %v656 = vmul.f32 %v648, %v655
        %v657 = vmul.f32 %v604, %v604
        %v658 = vmul.f32 %v644, %v644
        %v659 = vadd.f32 %v657, %v658
        %660 = vadd.xlane.f32.xlu0 %v659
        %v661 = vpop.xlane.xlu0 %660
        %v662 = vmul.f32 %v661, %v655
        %v663 = vmul.f32 %v656, %v656
        %v664 = vsub.f32 %v662, %v663
        %v665 = vmax.f32 %v664, 0.0
        %v666 = vsub.f32 %v604, %v656
        %v667 = vsub.f32 %v644, %v656
        %v668 = vadd.f32 %v665, 1e-05
        %v669 = vrsqrt.pop %v668
        %v670 = vmul.f32 %v669, %v668
        %v671 = vmul.f32 %v670, %v669
        %v672 = vmul.f32 0.5, %v671
        %v673 = vsub.f32 1.5, %v672
        %v674 = vmul.f32 %v669, %v673
        %vm675 = vweird.f32 %v668
        %vm676 = vweird.f32 %v669
        %vm677 = vmor %vm675, %vm676
        %v678 = vsel %vm677, %v669, %v674
        %v679 = vmul.f32 %v666, %v678
        %v680 = vmul.f32 %v667, %v678
        %v681 = vld [vmem:[#allocation7] sm:$0x3]
        %v683 = vperm.slane %v681, 0
        %v684 = vperm.slane %v681, 1
        %v687 = vmul.f32 %v679, %v683
        %v688 = vmul.f32 %v680, %v684
        %v689 = vld [vmem:[%s3] sm:$0x3]
        %v691 = vperm.slane %v689, 0
        %v692 = vperm.slane %v689, 1
        %v695 = vadd.f32 %v687, %v691
        %v696 = vadd.f32 %v688, %v692
        %v697 = vmax.f32 %v695, 0.0
        %v698 = vmax.f32 %v696, 0.0
        %v699 = vld [vmem:[#allocation8] sm:$0xff]
        %v700 = vld [vmem:[#allocation8 + $0x8] sm:$0xff]
        %v701 = vld [vmem:[#allocation8 + $0x10] sm:$0xff]
        %v702 = vld [vmem:[#allocation8 + $0x18] sm:$0xff]
        %v703 = vld [vmem:[#allocation8 + $0x20] sm:$0xff]
        %v704 = vld [vmem:[#allocation8 + $0x28] sm:$0xff]
        %v705 = vld [vmem:[#allocation8 + $0x30] sm:$0xff]
        %v706 = vld [vmem:[#allocation8 + $0x38] sm:$0xff]
        %v707 = vld [vmem:[#allocation8 + $0x40] sm:$0xff]
        %v708 = vld [vmem:[#allocation8 + $0x48] sm:$0xff]
        %v709 = vld [vmem:[#allocation8 + $0x50] sm:$0xff]
        %v710 = vld [vmem:[#allocation8 + $0x58] sm:$0xff]
        %v711 = vld [vmem:[#allocation8 + $0x60] sm:$0xff]
        %v712 = vld [vmem:[#allocation8 + $0x68] sm:$0xff]
        %v713 = vld [vmem:[#allocation8 + $0x70] sm:$0xff]
        %v714 = vld [vmem:[#allocation8 + $0x78] sm:$0xff]
        %v715 = vld [vmem:[#allocation8 + $0x80] sm:$0xff]
        %v716 = vld [vmem:[#allocation8 + $0x88] sm:$0xff]
        %v717 = vld [vmem:[#allocation8 + $0x90] sm:$0xff]
        %v718 = vld [vmem:[#allocation8 + $0x98] sm:$0xff]
        %v719 = vld [vmem:[#allocation8 + $0xa0] sm:$0xff]
        %v720 = vld [vmem:[#allocation8 + $0xa8] sm:$0xff]
        %v721 = vld [vmem:[#allocation8 + $0xb0] sm:$0xff]
        %v722 = vld [vmem:[#allocation8 + $0xb8] sm:$0xff]
        %v723 = vld [vmem:[#allocation8 + $0xc0] sm:$0xff]
        %v724 = vld [vmem:[#allocation8 + $0xc8] sm:$0xff]
        %v725 = vld [vmem:[#allocation8 + $0xd0] sm:$0xff]
        %v726 = vld [vmem:[#allocation8 + $0xd8] sm:$0xff]
        %v727 = vld [vmem:[#allocation8 + $0xe0] sm:$0xff]
        %v728 = vld [vmem:[#allocation8 + $0xe8] sm:$0xff]
        %v729 = vld [vmem:[#allocation8 + $0xf0] sm:$0xff]
        %v730 = vld [vmem:[#allocation8 + $0xf8] sm:$0xff]
        %v731 = vld [vmem:[#allocation8 + $0x100] sm:$0xff]
        %v732 = vld [vmem:[#allocation8 + $0x108] sm:$0xff]
        %v733 = vld [vmem:[#allocation8 + $0x110] sm:$0xff]
        %v734 = vld [vmem:[#allocation8 + $0x118] sm:$0xff]
        %v735 = vld [vmem:[#allocation8 + $0x120] sm:$0xff]
        %v736 = vld [vmem:[#allocation8 + $0x128] sm:$0xff]
        %v737 = vld [vmem:[#allocation8 + $0x130] sm:$0xff]
        %v738 = vld [vmem:[#allocation8 + $0x138] sm:$0xff]
        %v739 = vld [vmem:[#allocation8 + $0x140] sm:$0xff]
        %v740 = vld [vmem:[#allocation8 + $0x148] sm:$0xff]
        %v741 = vld [vmem:[#allocation8 + $0x150] sm:$0xff]
        %v742 = vld [vmem:[#allocation8 + $0x158] sm:$0xff]
        %v743 = vld [vmem:[#allocation8 + $0x160] sm:$0xff]
        %v744 = vld [vmem:[#allocation8 + $0x168] sm:$0xff]
        %v745 = vld [vmem:[#allocation8 + $0x170] sm:$0xff]
        %v746 = vld [vmem:[#allocation8 + $0x178] sm:$0xff]
        %v747 = vld [vmem:[#allocation8 + $0x180] sm:$0xff]
        %v748 = vld [vmem:[#allocation8 + $0x188] sm:$0xff]
        %v749 = vld [vmem:[#allocation8 + $0x190] sm:$0xff]
        %v750 = vld [vmem:[#allocation8 + $0x198] sm:$0xff]
        %v751 = vld [vmem:[#allocation8 + $0x1a0] sm:$0xff]
        %v752 = vld [vmem:[#allocation8 + $0x1a8] sm:$0xff]
        %v753 = vld [vmem:[#allocation8 + $0x1b0] sm:$0xff]
        %v754 = vld [vmem:[#allocation8 + $0x1b8] sm:$0xff]
        %v755 = vld [vmem:[#allocation8 + $0x1c0] sm:$0xff]
        %v756 = vld [vmem:[#allocation8 + $0x1c8] sm:$0xff]
        %v757 = vld [vmem:[#allocation8 + $0x1d0] sm:$0xff]
        %v758 = vld [vmem:[#allocation8 + $0x1d8] sm:$0xff]
        %v759 = vld [vmem:[#allocation8 + $0x1e0] sm:$0xff]
        %v760 = vld [vmem:[#allocation8 + $0x1e8] sm:$0xff]
        %v761 = vld [vmem:[#allocation8 + $0x1f0] sm:$0xff]
        %v762 = vld [vmem:[#allocation8 + $0x1f8] sm:$0xff]
        %763 = vmatpush.msra.mxu0 %v729
        %764 = vmatpush.msra.mxu0 %v727
        %765 = vmatpush.msra.mxu0 %v725
        %766 = vmatpush.msra.mxu0 %v723
        %767 = vmatpush.msra.mxu0 %v721
        %768 = vmatpush.msra.mxu0 %v719
        %769 = vmatpush.msra.mxu0 %v717
        %770 = vmatpush.msra.mxu0 %v715
        %771 = vmatpush.msra.mxu0 %v713
        %772 = vmatpush.msra.mxu0 %v711
        %773 = vmatpush.msra.mxu0 %v709
        %774 = vmatpush.msra.mxu0 %v707
        %775 = vmatpush.msra.mxu0 %v705
        %776 = vmatpush.msra.mxu0 %v703
        %777 = vmatpush.msra.mxu0 %v701
        %778 = vmatpush.msra.mxu0 %v699
        %779 = vmatmul.f32.gmra.mxu0 %v697
        %v780 = vpop.f32.mrf.mxu0
        %v781 = vadd.f32 0.0, %v780
        %782 = vdwg.mxu0
        %783 = vmatpush.msra.mxu0 %v761
        %784 = vmatpush.msra.mxu0 %v759
        %785 = vmatpush.msra.mxu0 %v757
        %786 = vmatpush.msra.mxu0 %v755
        %787 = vmatpush.msra.mxu0 %v753
        %788 = vmatpush.msra.mxu0 %v751
        %789 = vmatpush.msra.mxu0 %v749
        %790 = vmatpush.msra.mxu0 %v747
        %791 = vmatpush.msra.mxu0 %v745
        %792 = vmatpush.msra.mxu0 %v743
        %793 = vmatpush.msra.mxu0 %v741
        %794 = vmatpush.msra.mxu0 %v739
        %795 = vmatpush.msra.mxu0 %v737
        %796 = vmatpush.msra.mxu0 %v735
        %797 = vmatpush.msra.mxu0 %v733
        %798 = vmatpush.msra.mxu0 %v731
        %799 = vmatmul.f32.gmra.mxu0 %v698
        %v800 = vpop.f32.mrf.mxu0
        %v801 = vadd.f32 %v781, %v800
        %802 = vdwg.mxu0
        %803 = vmatpush.msra.mxu0 %v730
        %804 = vmatpush.msra.mxu0 %v728
        %805 = vmatpush.msra.mxu0 %v726
        %806 = vmatpush.msra.mxu0 %v724
        %807 = vmatpush.msra.mxu0 %v722
        %808 = vmatpush.msra.mxu0 %v720
        %809 = vmatpush.msra.mxu0 %v718
        %810 = vmatpush.msra.mxu0 %v716
        %811 = vmatpush.msra.mxu0 %v714
        %812 = vmatpush.msra.mxu0 %v712
        %813 = vmatpush.msra.mxu0 %v710
        %814 = vmatpush.msra.mxu0 %v708
        %815 = vmatpush.msra.mxu0 %v706
        %816 = vmatpush.msra.mxu0 %v704
        %817 = vmatpush.msra.mxu0 %v702
        %818 = vmatpush.msra.mxu0 %v700
        %819 = vmatmul.f32.gmra.mxu0 %v697
        %v820 = vpop.f32.mrf.mxu0
        %v821 = vadd.f32 0.0, %v820
        %822 = vdwg.mxu0
        %823 = vmatpush.msra.mxu0 %v762
        %824 = vmatpush.msra.mxu0 %v760
        %825 = vmatpush.msra.mxu0 %v758
        %826 = vmatpush.msra.mxu0 %v756
        %827 = vmatpush.msra.mxu0 %v754
        %828 = vmatpush.msra.mxu0 %v752
        %829 = vmatpush.msra.mxu0 %v750
        %830 = vmatpush.msra.mxu0 %v748
        %831 = vmatpush.msra.mxu0 %v746
        %832 = vmatpush.msra.mxu0 %v744
        %833 = vmatpush.msra.mxu0 %v742
        %834 = vmatpush.msra.mxu0 %v740
        %835 = vmatpush.msra.mxu0 %v738
        %836 = vmatpush.msra.mxu0 %v736
        %837 = vmatpush.msra.mxu0 %v734
        %838 = vmatpush.msra.mxu0 %v732
        %839 = vmatmul.f32.gmra.mxu0 %v698
        %v840 = vpop.f32.mrf.mxu0
        %v841 = vadd.f32 %v821, %v840
        %842 = vdwg.mxu0
        %v843 = vadd.f32 %v801, %v841
        %844 = vadd.xlane.f32.xlu0 %v843
        %v845 = vpop.xlane.xlu0 %844
        %v846 = vmul.f32 %v845, %v655
        %v847 = vmul.f32 %v801, %v801
        %v848 = vmul.f32 %v841, %v841
        %v849 = vadd.f32 %v847, %v848
        %850 = vadd.xlane.f32.xlu0 %v849
        %v851 = vpop.xlane.xlu0 %850
        %v852 = vmul.f32 %v851, %v655
        %v853 = vmul.f32 %v846, %v846
        %v854 = vsub.f32 %v852, %v853
        %v855 = vmax.f32 %v854, 0.0
        %v856 = vsub.f32 %v801, %v846
        %v857 = vsub.f32 %v841, %v846
        %v858 = vadd.f32 %v855, 1e-05
        %v859 = vrsqrt.pop %v858
        %v860 = vmul.f32 %v859, %v858
        %v861 = vmul.f32 %v860, %v859
        %v862 = vmul.f32 0.5, %v861
        %v863 = vsub.f32 1.5, %v862
        %v864 = vmul.f32 %v859, %v863
        %vm865 = vweird.f32 %v858
        %vm866 = vweird.f32 %v859
        %vm867 = vmor %vm865, %vm866
        %v868 = vsel %vm867, %v859, %v864
        %v869 = vmul.f32 %v856, %v868
        %v870 = vmul.f32 %v857, %v868
        %v871 = vld [vmem:[%s5] sm:$0x3]
        %v873 = vperm.slane %v871, 0
        %v874 = vperm.slane %v871, 1
        %v877 = vmul.f32 %v869, %v873
        %v878 = vmul.f32 %v870, %v874
        %v879 = vld [vmem:[#allocation10] sm:$0x3]
        %v881 = vperm.slane %v879, 0
        %v882 = vperm.slane %v879, 1
        %v885 = vadd.f32 %v877, %v881
        %v886 = vadd.f32 %v878, %v882
        %v887 = vmax.f32 %v885, 0.0
        %v888 = vmax.f32 %v886, 0.0
        %v889 = vadd.f32 %v887, %v697
        %v890 = vadd.f32 %v888, %v698
        %v891 = vld [vmem:[#allocation11] sm:$0xff]
        %v892 = vld [vmem:[#allocation11 + $0x8] sm:$0xff]
        %v893 = vld [vmem:[#allocation11 + $0x10] sm:$0xff]
        %v894 = vld [vmem:[#allocation11 + $0x18] sm:$0xff]
        %v895 = vld [vmem:[#allocation11 + $0x20] sm:$0xff]
        %v896 = vld [vmem:[#allocation11 + $0x28] sm:$0xff]
        %v897 = vld [vmem:[#allocation11 + $0x30] sm:$0xff]
        %v898 = vld [vmem:[#allocation11 + $0x38] sm:$0xff]
        %v899 = vld [vmem:[#allocation11 + $0x40] sm:$0xff]
        %v900 = vld [vmem:[#allocation11 + $0x48] sm:$0xff]
        %v901 = vld [vmem:[#allocation11 + $0x50] sm:$0xff]
        %v902 = vld [vmem:[#allocation11 + $0x58] sm:$0xff]
        %v903 = vld [vmem:[#allocation11 + $0x60] sm:$0xff]
        %v904 = vld [vmem:[#allocation11 + $0x68] sm:$0xff]
        %v905 = vld [vmem:[#allocation11 + $0x70] sm:$0xff]
        %v906 = vld [vmem:[#allocation11 + $0x78] sm:$0xff]
        %v907 = vld [vmem:[#allocation11 + $0x80] sm:$0xff]
        %v908 = vld [vmem:[#allocation11 + $0x88] sm:$0xff]
        %v909 = vld [vmem:[#allocation11 + $0x90] sm:$0xff]
        %v910 = vld [vmem:[#allocation11 + $0x98] sm:$0xff]
        %v911 = vld [vmem:[#allocation11 + $0xa0] sm:$0xff]
        %v912 = vld [vmem:[#allocation11 + $0xa8] sm:$0xff]
        %v913 = vld [vmem:[#allocation11 + $0xb0] sm:$0xff]
        %v914 = vld [vmem:[#allocation11 + $0xb8] sm:$0xff]
        %v915 = vld [vmem:[#allocation11 + $0xc0] sm:$0xff]
        %v916 = vld [vmem:[#allocation11 + $0xc8] sm:$0xff]
        %v917 = vld [vmem:[#allocation11 + $0xd0] sm:$0xff]
        %v918 = vld [vmem:[#allocation11 + $0xd8] sm:$0xff]
        %v919 = vld [vmem:[#allocation11 + $0xe0] sm:$0xff]
        %v920 = vld [vmem:[#allocation11 + $0xe8] sm:$0xff]
        %v921 = vld [vmem:[#allocation11 + $0xf0] sm:$0xff]
        %v922 = vld [vmem:[#allocation11 + $0xf8] sm:$0xff]
        %v923 = vld [vmem:[#allocation11 + $0x100] sm:$0xff]
        %v924 = vld [vmem:[#allocation11 + $0x108] sm:$0xff]
        %v925 = vld [vmem:[#allocation11 + $0x110] sm:$0xff]
        %v926 = vld [vmem:[#allocation11 + $0x118] sm:$0xff]
        %v927 = vld [vmem:[#allocation11 + $0x120] sm:$0xff]
        %v928 = vld [vmem:[#allocation11 + $0x128] sm:$0xff]
        %v929 = vld [vmem:[#allocation11 + $0x130] sm:$0xff]
        %v930 = vld [vmem:[#allocation11 + $0x138] sm:$0xff]
        %v931 = vld [vmem:[#allocation11 + $0x140] sm:$0xff]
        %v932 = vld [vmem:[#allocation11 + $0x148] sm:$0xff]
        %v933 = vld [vmem:[#allocation11 + $0x150] sm:$0xff]
        %v934 = vld [vmem:[#allocation11 + $0x158] sm:$0xff]
        %v935 = vld [vmem:[#allocation11 + $0x160] sm:$0xff]
        %v936 = vld [vmem:[#allocation11 + $0x168] sm:$0xff]
        %v937 = vld [vmem:[#allocation11 + $0x170] sm:$0xff]
        %v938 = vld [vmem:[#allocation11 + $0x178] sm:$0xff]
        %v939 = vld [vmem:[#allocation11 + $0x180] sm:$0xff]
        %v940 = vld [vmem:[#allocation11 + $0x188] sm:$0xff]
        %v941 = vld [vmem:[#allocation11 + $0x190] sm:$0xff]
        %v942 = vld [vmem:[#allocation11 + $0x198] sm:$0xff]
        %v943 = vld [vmem:[#allocation11 + $0x1a0] sm:$0xff]
        %v944 = vld [vmem:[#allocation11 + $0x1a8] sm:$0xff]
        %v945 = vld [vmem:[#allocation11 + $0x1b0] sm:$0xff]
        %v946 = vld [vmem:[#allocation11 + $0x1b8] sm:$0xff]
        %v947 = vld [vmem:[#allocation11 + $0x1c0] sm:$0xff]
        %v948 = vld [vmem:[#allocation11 + $0x1c8] sm:$0xff]
        %v949 = vld [vmem:[#allocation11 + $0x1d0] sm:$0xff]
        %v950 = vld [vmem:[#allocation11 + $0x1d8] sm:$0xff]
        %v951 = vld [vmem:[#allocation11 + $0x1e0] sm:$0xff]
        %v952 = vld [vmem:[#allocation11 + $0x1e8] sm:$0xff]
        %v953 = vld [vmem:[#allocation11 + $0x1f0] sm:$0xff]
        %v954 = vld [vmem:[#allocation11 + $0x1f8] sm:$0xff]
        %v955 = vld [vmem:[%s8] sm:$0x3]
        %v957 = vperm.slane %v955, 0
        %v958 = vperm.slane %v955, 1
        %961 = vmatpush.msra.mxu0 %v921
        %962 = vmatpush.msra.mxu0 %v919
        %963 = vmatpush.msra.mxu0 %v917
        %964 = vmatpush.msra.mxu0 %v915
        %965 = vmatpush.msra.mxu0 %v913
        %966 = vmatpush.msra.mxu0 %v911
        %967 = vmatpush.msra.mxu0 %v909
        %968 = vmatpush.msra.mxu0 %v907
        %969 = vmatpush.msra.mxu0 %v905
        %970 = vmatpush.msra.mxu0 %v903
        %971 = vmatpush.msra.mxu0 %v901
        %972 = vmatpush.msra.mxu0 %v899
        %973 = vmatpush.msra.mxu0 %v897
        %974 = vmatpush.msra.mxu0 %v895
        %975 = vmatpush.msra.mxu0 %v893
        %976 = vmatpush.msra.mxu0 %v891
        %977 = vmatmul.f32.gmra.mxu0 %v889
        %v978 = vpop.f32.mrf.mxu0
        %v979 = vadd.f32 %v957, %v978
        %980 = vdwg.mxu0
        %981 = vmatpush.msra.mxu0 %v953
        %982 = vmatpush.msra.mxu0 %v951
        %983 = vmatpush.msra.mxu0 %v949
        %984 = vmatpush.msra.mxu0 %v947
        %985 = vmatpush.msra.mxu0 %v945
        %986 = vmatpush.msra.mxu0 %v943
        %987 = vmatpush.msra.mxu0 %v941
        %988 = vmatpush.msra.mxu0 %v939
        %989 = vmatpush.msra.mxu0 %v937
        %990 = vmatpush.msra.mxu0 %v935
        %991 = vmatpush.msra.mxu0 %v933
        %992 = vmatpush.msra.mxu0 %v931
        %993 = vmatpush.msra.mxu0 %v929
        %994 = vmatpush.msra.mxu0 %v927
        %995 = vmatpush.msra.mxu0 %v925
        %996 = vmatpush.msra.mxu0 %v923
        %997 = vmatmul.f32.gmra.mxu0 %v890
        %v998 = vpop.f32.mrf.mxu0
        %v999 = vadd.f32 %v979, %v998
        %1000 = vdwg.mxu0
        %1001 = vmatpush.msra.mxu0 %v922
        %1002 = vmatpush.msra.mxu0 %v920
        %1003 = vmatpush.msra.mxu0 %v918
        %1004 = vmatpush.msra.mxu0 %v916
        %1005 = vmatpush.msra.mxu0 %v914
        %1006 = vmatpush.msra.mxu0 %v912
        %1007 = vmatpush.msra.mxu0 %v910
        %1008 = vmatpush.msra.mxu0 %v908
        %1009 = vmatpush.msra.mxu0 %v906
        %1010 = vmatpush.msra.mxu0 %v904
        %1011 = vmatpush.msra.mxu0 %v902
        %1012 = vmatpush.msra.mxu0 %v900
        %1013 = vmatpush.msra.mxu0 %v898
        %1014 = vmatpush.msra.mxu0 %v896
        %1015 = vmatpush.msra.mxu0 %v894
        %1016 = vmatpush.msra.mxu0 %v892
        %1017 = vmatmul.f32.gmra.mxu0 %v889
        %v1018 = vpop.f32.mrf.mxu0
        %v1019 = vadd.f32 %v958, %v1018
        %1020 = vdwg.mxu0
        %1021 = vmatpush.msra.mxu0 %v954
        %1022 = vmatpush.msra.mxu0 %v952
        %1023 = vmatpush.msra.mxu0 %v950
        %1024 = vmatpush.msra.mxu0 %v948
        %1025 = vmatpush.msra.mxu0 %v946
        %1026 = vmatpush.msra.mxu0 %v944
        %1027 = vmatpush.msra.mxu0 %v942
        %1028 = vmatpush.msra.mxu0 %v940
        %1029 = vmatpush.msra.mxu0 %v938
        %1030 = vmatpush.msra.mxu0 %v936
        %1031 = vmatpush.msra.mxu0 %v934
        %1032 = vmatpush.msra.mxu0 %v932
        %1033 = vmatpush.msra.mxu0 %v930
        %1034 = vmatpush.msra.mxu0 %v928
        %1035 = vmatpush.msra.mxu0 %v926
        %1036 = vmatpush.msra.mxu0 %v924
        %1037 = vmatmul.f32.gmra.mxu0 %v890
        %v1038 = vpop.f32.mrf.mxu0
        %v1039 = vadd.f32 %v1019, %v1038
        %1040 = vdwg.mxu0
        %v1041 = vld [vmem:[#allocation13] sm:$0xff]
        %v1042 = vld [vmem:[#allocation13 + $0x8] sm:$0xff]
        %v1043 = vld [vmem:[#allocation13 + $0x10] sm:$0xff]
        %v1044 = vld [vmem:[#allocation13 + $0x18] sm:$0xff]
        %v1045 = vld [vmem:[#allocation13 + $0x20] sm:$0xff]
        %v1046 = vld [vmem:[#allocation13 + $0x28] sm:$0xff]
        %v1047 = vld [vmem:[#allocation13 + $0x30] sm:$0xff]
        %v1048 = vld [vmem:[#allocation13 + $0x38] sm:$0xff]
        %v1049 = vld [vmem:[#allocation13 + $0x40] sm:$0xff]
        %v1050 = vld [vmem:[#allocation13 + $0x48] sm:$0xff]
        %v1051 = vld [vmem:[#allocation13 + $0x50] sm:$0xff]
        %v1052 = vld [vmem:[#allocation13 + $0x58] sm:$0xff]
        %v1053 = vld [vmem:[#allocation13 + $0x60] sm:$0xff]
        %v1054 = vld [vmem:[#allocation13 + $0x68] sm:$0xff]
        %v1055 = vld [vmem:[#allocation13 + $0x70] sm:$0xff]
        %v1056 = vld [vmem:[#allocation13 + $0x78] sm:$0xff]
        %v1057 = vld [vmem:[#allocation13 + $0x80] sm:$0xff]
        %v1058 = vld [vmem:[#allocation13 + $0x88] sm:$0xff]
        %v1059 = vld [vmem:[#allocation13 + $0x90] sm:$0xff]
        %v1060 = vld [vmem:[#allocation13 + $0x98] sm:$0xff]
        %v1061 = vld [vmem:[#allocation13 + $0xa0] sm:$0xff]
        %v1062 = vld [vmem:[#allocation13 + $0xa8] sm:$0xff]
        %v1063 = vld [vmem:[#allocation13 + $0xb0] sm:$0xff]
        %v1064 = vld [vmem:[#allocation13 + $0xb8] sm:$0xff]
        %v1065 = vld [vmem:[#allocation13 + $0xc0] sm:$0xff]
        %v1066 = vld [vmem:[#allocation13 + $0xc8] sm:$0xff]
        %v1067 = vld [vmem:[#allocation13 + $0xd0] sm:$0xff]
        %v1068 = vld [vmem:[#allocation13 + $0xd8] sm:$0xff]
        %v1069 = vld [vmem:[#allocation13 + $0xe0] sm:$0xff]
        %v1070 = vld [vmem:[#allocation13 + $0xe8] sm:$0xff]
        %v1071 = vld [vmem:[#allocation13 + $0xf0] sm:$0xff]
        %v1072 = vld [vmem:[#allocation13 + $0xf8] sm:$0xff]
        %v1073 = vld [vmem:[%s10] sm:$0x1]
        %v1075 = vperm.slane %v1073, 0
        %1077 = vmatpush.msra.mxu0 %v1056
        %1078 = vmatpush.msra.mxu0 %v1055
        %1079 = vmatpush.msra.mxu0 %v1054
        %1080 = vmatpush.msra.mxu0 %v1053
        %1081 = vmatpush.msra.mxu0 %v1052
        %1082 = vmatpush.msra.mxu0 %v1051
        %1083 = vmatpush.msra.mxu0 %v1050
        %1084 = vmatpush.msra.mxu0 %v1049
        %1085 = vmatpush.msra.mxu0 %v1048
        %1086 = vmatpush.msra.mxu0 %v1047
        %1087 = vmatpush.msra.mxu0 %v1046
        %1088 = vmatpush.msra.mxu0 %v1045
        %1089 = vmatpush.msra.mxu0 %v1044
        %1090 = vmatpush.msra.mxu0 %v1043
        %1091 = vmatpush.msra.mxu0 %v1042
        %1092 = vmatpush.msra.mxu0 %v1041
        %1093 = vmatmul.f32.gmra.mxu0 %v999
        %v1094 = vpop.f32.mrf.mxu0
        %v1095 = vadd.f32 %v1075, %v1094
        %1096 = vdwg.mxu0
        %1097 = vmatpush.msra.mxu0 %v1072
        %1098 = vmatpush.msra.mxu0 %v1071
        %1099 = vmatpush.msra.mxu0 %v1070
        %1100 = vmatpush.msra.mxu0 %v1069
        %1101 = vmatpush.msra.mxu0 %v1068
        %1102 = vmatpush.msra.mxu0 %v1067
        %1103 = vmatpush.msra.mxu0 %v1066
        %1104 = vmatpush.msra.mxu0 %v1065
        %1105 = vmatpush.msra.mxu0 %v1064
        %1106 = vmatpush.msra.mxu0 %v1063
        %1107 = vmatpush.msra.mxu0 %v1062
        %1108 = vmatpush.msra.mxu0 %v1061
        %1109 = vmatpush.msra.mxu0 %v1060
        %1110 = vmatpush.msra.mxu0 %v1059
        %1111 = vmatpush.msra.mxu0 %v1058
        %1112 = vmatpush.msra.mxu0 %v1057
        %1113 = vmatmul.f32.gmra.mxu0 %v1039
        %v1114 = vpop.f32.mrf.mxu0
        %v1115 = vadd.f32 %v1095, %v1114
        %1116 = vdwg.mxu0
        %1117 = vst [vmem:[%s499] sm:$0xff] %v1115
        %s1118 = sand.u32 %s275, 1
        %s1119 = scalar_lea.sflag [#allocation4], %s1118
        %s1120 = sand.u32 %s275, 1
        %s1121 = smul.addr %s1120, 8
        %s1122 = scalar_lea.vmem [#allocation14], %s1121
        // Predicated region
        $region93: #{tpu_custom_call.1} parent=63 // pred_check
          %p1123 = pneg %p285
        $region94: #{tpu_custom_call.1} parent=63 // pred_check_branch
          %1125 = sbr.rel (%p1123) target = $region96
        $region95: #{tpu_custom_call.1} parent=63 // pred_region
          %1127 = vsyncadd %s1119, 0
          %s1128 = smul.addr %s31, 8
          %s1129 = scalar_lea.hbm %s11, %s1128
          %s1131 = sshll.u32 %s1122, 4
          %s1132 = int_to_ptr.vmem [resolvable:$true] %s1131
          %s1133 = sshll.u32 %s1129, 4
          %s1134 = int_to_ptr.hbm [resolvable:$true] %s1133
          %1136 = dma.vmem_to_hbm [thread:$0]  %s1132, 128, %s1134, %s1119
        $region96: #{tpu_custom_call.1} parent=63 // pred_fallthru
          _
      $region64: #{tpu_custom_call.1} parent=5 // pred_fallthru
        _
      %p1137 = scmp.le.s32.totalorder 2, %s26
      // Predicated region
      $region97: #{tpu_custom_call.1} parent=5 // pred_check
        %p1138 = pneg %p1137
      $region98: #{tpu_custom_call.1} parent=5 // pred_check_branch
        %1140 = sbr.rel (%p1138) target = $region100
      $region99: #{tpu_custom_call.1} parent=5 // pred_region
        %s1141 = ssub.s32 %s26, 2
        // Predicated region
        $region101: #{tpu_custom_call.1} parent=99 // pred_check
          %p1142 = pneg %p291
        $region102: #{tpu_custom_call.1} parent=99 // pred_check_branch
          %1144 = sbr.rel (%p1142) target = $region104
        $region103: #{tpu_custom_call.1} parent=99 // pred_region
          %s1145 = sand.u32 %s276, 1
          %s1146 = scalar_lea.sflag [#allocation4], %s1145
          %s1147 = sand.u32 %s276, 1
          %s1148 = smul.addr %s1147, 8
          %s1149 = scalar_lea.vmem [#allocation14], %s1148
          %1151 = dma.done %s1146, 128
        $region104: #{tpu_custom_call.1} parent=99 // pred_fallthru
          _
      $region100: #{tpu_custom_call.1} parent=5 // pred_fallthru
        _
    $region6: #{tpu_custom_call.1} parent=1 // loop_footer
      %s30 = sadd.s32 1, %s26
    $region7: #{tpu_custom_call.1} parent=1 // loop_footer_branch
      %25 = sbr.rel target = $region3
    $region8: #{tpu_custom_call.1} parent=1 // loop_exit
      _
    %1152 = vsyncpa [#allocation3], 1
    %s1153 = scalar_lea.sflag [#allocation3], 1
    %1154 = vsyncpa %s1153, 1
    %1155 = vsyncpa [#allocation6], 1
    %1156 = vsyncpa [#allocation9], 1
    %1157 = vsyncpa [#allocation12], 1
    %1158 = vsyncpa [#allocation4], 1
    %s1159 = scalar_lea.sflag [#allocation4], 1
    %1160 = vsyncpa %s1159, 1

</llo_original>
